<compile_context>
chip_gen: v5e
topology: v5e:2x2
jax: 0.10.0
libtpu: 0.0.40
codegen_flags: <defaults>
</compile_context>

<pallas_src>
import functools

import numpy as np
import jax
import jax.numpy as jnp
from jax import lax
from jax.experimental import pallas as pl
from jax.experimental.pallas import tpu as pltpu

DIM_MODEL = 64
NUM_HEADS = 8
HEAD_DIM = DIM_MODEL // NUM_HEADS   # 8
DIM_FF = 128
LN_EPS = 1e-5


def _layernorm(x, g, b):
    mu = jnp.mean(x, axis=-1, keepdims=True)
    var = jnp.mean((x - mu) ** 2, axis=-1, keepdims=True)
    return (x - mu) * lax.rsqrt(var + LN_EPS) * g + b


def _encoder_kernel(num_heads, head_dim,
                    x_ref, mask_ref, wqkv_ref, bqkv_ref, wo_ref, bo_ref,
                    g1_ref, be1_ref, w1_ref, fb1_ref, w2_ref, fb2_ref,
                    g2_ref, be2_ref, o_ref):
    # One batch element per grid step.
    x = x_ref[0]                                   # (S, D)
    S, D = x.shape
    H, C = num_heads, head_dim

    # --- Fused QKV projection (1/sqrt(C) already folded into the Q columns). --
    qkv = jnp.dot(x, wqkv_ref[...],
                  preferred_element_type=jnp.float32) + bqkv_ref[...]   # (S, 3D)
    # Transposed copy: per-head K / V tiles become sublane (row) slices.
    qkvT = qkv.T                                                        # (3D, S)

    # --- Per-head scores, stacked, then ONE masked softmax over all heads. ---
    score_blocks = []
    for h in range(H):                                  # static unroll, H = 8
        q_h = qkv[:, h * C:(h + 1) * C]                 # (S, C)   (scaled Q)
        k_hT = qkvT[D + h * C: D + (h + 1) * C]         # (C, S)   sublane slice
        score_blocks.append(
            jnp.dot(q_h, k_hT, preferred_element_type=jnp.float32))     # (S, S)
    scores = jnp.concatenate(score_blocks, axis=0)      # (H*S, S)
    scores = scores + mask_ref[...]                     # mask pre-tiled on host

    m = jnp.max(scores, axis=-1, keepdims=True)
    e = jnp.exp(scores - m)
    denom = jnp.sum(e, axis=-1, keepdims=True)
    # approx=True would push this onto the EUP but may exceed the 1e-4 check.
    p = e * pl.reciprocal(denom, approx=False)          # (H*S, S)

    # --- Per-head PV, assembled along sublanes; single output projection. ----
    ctx_blocks = []
    for h in range(H):
        v_hT = qkvT[2 * D + h * C: 2 * D + (h + 1) * C]                 # (C, S)
        p_h = p[h * S:(h + 1) * S]                                      # (S, S)
        # ctxT_h[c, s] = sum_u v[u, c] * p[s, u]   (trans-B dot, MXU-native)
        ctx_blocks.append(
            lax.dot_general(v_hT, p_h, (((1,), (1,)), ((), ())),
                            preferred_element_type=jnp.float32))        # (C, S)
    ctx = jnp.concatenate(ctx_blocks, axis=0).T                         # (S, D)

    attn = jnp.dot(ctx, wo_ref[...],
                   preferred_element_type=jnp.float32) + bo_ref[...]

    # --- Residual 1 + LayerNorm (dropout == identity at inference). ----------
    h1 = _layernorm(x + attn, g1_ref[...], be1_ref[...])

    # --- Feed-forward: Linear -> ReLU -> Linear. ------------------------------
    ff = jnp.maximum(
        jnp.dot(h1, w1_ref[...], preferred_element_type=jnp.float32) + fb1_ref[...],
        0.0)
    ff = jnp.dot(ff, w2_ref[...], preferred_element_type=jnp.float32) + fb2_ref[...]

    # --- Residual 2 + LayerNorm. ----------------------------------------------
    out = _layernorm(h1 + ff, g2_ref[...], be2_ref[...])
    o_ref[0] = out.astype(o_ref.dtype)


def transformer_encoder_layer(src, params):
    B, F, T, D = src.shape
    S = F * T
    x = src.reshape(B, S, D)
    H, C = NUM_HEADS, HEAD_DIM
    inv_scale = jnp.float32(1.0 / (C ** 0.5))

    # ---- Host-side preprocessing (fused QKV weights, folded scale, mask). ----
    wqkv = jnp.concatenate(
        [params["wq"] * inv_scale, params["wk"], params["wv"]], axis=1)   # (D, 3D)
    bqkv = jnp.concatenate(
        [params["bq"] * inv_scale, params["bk"], params["bv"]])           # (3D,)

    # Frame-causal mask on the flattened (frame, time) key axis: query frame d
    # may only attend to key frames e < d (frame 0 -> all -inf -> NaN rows,
    # exactly like the torch code).  Pre-tiled per head -> (H*S, S).
    row_f = jnp.arange(S)[:, None] // T
    col_f = jnp.arange(S)[None, :] // T
    mask = jnp.where(col_f >= row_f, -jnp.inf, 0.0).astype(jnp.float32)
    mask = jnp.tile(mask, (H, 1))                                          # (H*S, S)

    def as2d(v):
        return v.reshape(1, -1) if v.ndim == 1 else v

    weights = [
        mask, wqkv, as2d(bqkv),
        params["wo"], as2d(params["bo"]),
        as2d(params["ln1_g"]), as2d(params["ln1_b"]),
        params["w1"], as2d(params["b1ff"]),
        params["w2"], as2d(params["b2ff"]),
        as2d(params["ln2_g"]), as2d(params["ln2_b"]),
    ]

    kernel = functools.partial(_encoder_kernel, NUM_HEADS, HEAD_DIM)

    in_specs = [pl.BlockSpec((1, S, D), lambda b: (b, 0, 0))]
    for w in weights:
        in_specs.append(pl.BlockSpec(w.shape, lambda b, _nd=w.ndim: (0,) * _nd))

    out = pl.pallas_call(
        kernel,
        out_shape=jax.ShapeDtypeStruct((B, S, D), src.dtype),
        grid=(B,),
        in_specs=in_specs,
        out_specs=pl.BlockSpec((1, S, D), lambda b: (b, 0, 0)),
        compiler_params=pltpu.CompilerParams(
            dimension_semantics=("parallel",)),
    )(x, *weights)
    return out.reshape(B, F, T, D)


def ref_forward(src, params):
    """Pure-JAX reference mirroring the torch code structure."""
    B, F, T, D = src.shape
    H, C = NUM_HEADS, HEAD_DIM
    inv_scale = jnp.float32(1.0 / (C ** 0.5))
    heads = []
    for h in range(H):
        sl = slice(h * C, (h + 1) * C)
        q = src @ params["wq"][:, sl] + params["bq"][sl]          # (B,F,T,C)
        k = src @ params["wk"][:, sl] + params["bk"][sl]
        v = src @ params["wv"][:, sl] + params["bv"][sl]
        att = jnp.einsum("bdtc,beuc->bdteu", q, k)
        d_idx = jnp.arange(F)[:, None]
        e_idx = jnp.arange(F)[None, :]
        mask = jnp.where(e_idx >= d_idx, -jnp.inf, 0.0)           # (F_d, F_e)
        att = att + mask[None, :, None, :, None]
        a = att.reshape(B, F * T, F * T) * inv_scale
        m = jnp.max(a, axis=-1, keepdims=True)
        e = jnp.exp(a - m)
        p = e / jnp.sum(e, axis=-1, keepdims=True)
        heads.append(p @ v.reshape(B, F * T, C))
    cat = jnp.concatenate(heads, axis=-1)                          # (B, S, D)
    attn = cat @ params["wo"] + params["bo"]
    x = src.reshape(B, F * T, D)
    h1 = _layernorm(x + attn, params["ln1_g"], params["ln1_b"])
    ff = jnp.maximum(h1 @ params["w1"] + params["b1ff"], 0.0)
    ff = ff @ params["w2"] + params["b2ff"]
    out = _layernorm(h1 + ff, params["ln2_g"], params["ln2_b"])
    return out.reshape(B, F, T, D)


if __name__ == "__main__":
    B, F, T, D = 2, 4, 8, DIM_MODEL
    key = jax.random.PRNGKey(0)
    keys = jax.random.split(key, 17)

    src = jax.random.normal(keys[0], (B, F, T, D), jnp.float32)

    def nrm(k, shape, scale=0.05):
        return scale * jax.random.normal(k, shape, jnp.float32)

    params = {
        "wq": nrm(keys[1], (D, D)),        "bq": nrm(keys[2], (D,)),
        "wk": nrm(keys[3], (D, D)),        "bk": nrm(keys[4], (D,)),
        "wv": nrm(keys[5], (D, D)),        "bv": nrm(keys[6], (D,)),
        "wo": nrm(keys[7], (D, D)),        "bo": nrm(keys[8], (D,)),
        "ln1_g": 1.0 + nrm(keys[9], (D,)), "ln1_b": nrm(keys[10], (D,)),
        "w1": nrm(keys[11], (D, DIM_FF)),  "b1ff": nrm(keys[12], (DIM_FF,)),
        "w2": nrm(keys[13], (DIM_FF, D)),  "b2ff": nrm(keys[14], (D,)),
        "ln2_g": 1.0 + nrm(keys[15], (D,)), "ln2_b": nrm(keys[16], (D,)),
    }

    out = jax.block_until_ready(transformer_encoder_layer(src, params))
    ref = jax.block_until_ready(ref_forward(src, params))

    assert out.shape == (B, F, T, D)
    # frame-0 rows are NaN by construction (all-masked softmax), matching torch.
    if not np.allclose(np.asarray(out), np.asarray(ref),
                       rtol=1e-4, atol=1e-4, equal_nan=True):
        raise AssertionError("Pallas kernel does not match pure-JAX reference")
    print("KERNEL_OK")
</pallas_src>

<mosaic_0001>
module attributes {stable_mosaic.version = 11 : i64} {
  func.func @_encoder_kernel(%arg0: i32, %arg1: memref<1x32x64xf32, #tpu.memory_space<vmem>>, %arg2: memref<256x32xf32, #tpu.memory_space<vmem>>, %arg3: memref<64x192xf32, #tpu.memory_space<vmem>>, %arg4: memref<1x192xf32, #tpu.memory_space<vmem>>, %arg5: memref<64x64xf32, #tpu.memory_space<vmem>>, %arg6: memref<1x64xf32, #tpu.memory_space<vmem>>, %arg7: memref<1x64xf32, #tpu.memory_space<vmem>>, %arg8: memref<1x64xf32, #tpu.memory_space<vmem>>, %arg9: memref<64x128xf32, #tpu.memory_space<vmem>>, %arg10: memref<1x128xf32, #tpu.memory_space<vmem>>, %arg11: memref<128x64xf32, #tpu.memory_space<vmem>>, %arg12: memref<1x64xf32, #tpu.memory_space<vmem>>, %arg13: memref<1x64xf32, #tpu.memory_space<vmem>>, %arg14: memref<1x64xf32, #tpu.memory_space<vmem>>, %arg15: memref<1x32x64xf32, #tpu.memory_space<vmem>>) attributes {dimension_semantics = [#tpu.dimension_semantics<parallel>], iteration_bounds = array<i64: 2>, scalar_prefetch = 0 : i64, scratch_operands = 0 : i64, tpu.core_type = #tpu.core_type<tc>, window_params = [{transform_indices = @transform_0, window_bounds = array<i64: 1, 32, 64>}, {pipeline_mode = #tpu.pipeline_mode<synchronous>, transform_indices = @transform_1, window_bounds = array<i64: 256, 32>}, {pipeline_mode = #tpu.pipeline_mode<synchronous>, transform_indices = @transform_2, window_bounds = array<i64: 64, 192>}, {pipeline_mode = #tpu.pipeline_mode<synchronous>, transform_indices = @transform_3, window_bounds = array<i64: 1, 192>}, {pipeline_mode = #tpu.pipeline_mode<synchronous>, transform_indices = @transform_4, window_bounds = array<i64: 64, 64>}, {pipeline_mode = #tpu.pipeline_mode<synchronous>, transform_indices = @transform_5, window_bounds = array<i64: 1, 64>}, {pipeline_mode = #tpu.pipeline_mode<synchronous>, transform_indices = @transform_6, window_bounds = array<i64: 1, 64>}, {pipeline_mode = #tpu.pipeline_mode<synchronous>, transform_indices = @transform_7, window_bounds = array<i64: 1, 64>}, {pipeline_mode = #tpu.pipeline_mode<synchronous>, transform_indices = @transform_8, window_bounds = array<i64: 64, 128>}, {pipeline_mode = #tpu.pipeline_mode<synchronous>, transform_indices = @transform_9, window_bounds = array<i64: 1, 128>}, {pipeline_mode = #tpu.pipeline_mode<synchronous>, transform_indices = @transform_10, window_bounds = array<i64: 128, 64>}, {pipeline_mode = #tpu.pipeline_mode<synchronous>, transform_indices = @transform_11, window_bounds = array<i64: 1, 64>}, {pipeline_mode = #tpu.pipeline_mode<synchronous>, transform_indices = @transform_12, window_bounds = array<i64: 1, 64>}, {pipeline_mode = #tpu.pipeline_mode<synchronous>, transform_indices = @transform_13, window_bounds = array<i64: 1, 64>}, {transform_indices = @transform_14, window_bounds = array<i64: 1, 32, 64>}]} {
    %c0 = arith.constant 0 : index
    %c0_0 = arith.constant 0 : index
    %c0_1 = arith.constant 0 : index
    %0 = vector.load %arg1[%c0, %c0_0, %c0_1] : memref<1x32x64xf32, #tpu.memory_space<vmem>>, vector<1x32x64xf32>
    %1 = vector.shape_cast %0 : vector<1x32x64xf32> to vector<32x64xf32>
    %c0_2 = arith.constant 0 : index
    %c0_3 = arith.constant 0 : index
    %2 = vector.load %arg3[%c0_2, %c0_3] : memref<64x192xf32, #tpu.memory_space<vmem>>, vector<64x192xf32>
    %cst = arith.constant dense<0.000000e+00> : vector<32x192xf32>
    %3 = tpu.matmul %1, %2, %cst {dimension_numbers = #tpu.dot_dimension_numbers<[1], [0], [0], [1], [0, 0, 1, 1], [], []>} : vector<32x64xf32>, vector<64x192xf32>, vector<32x192xf32> -> vector<32x192xf32>
    %c0_4 = arith.constant 0 : index
    %c0_5 = arith.constant 0 : index
    %4 = vector.load %arg4[%c0_4, %c0_5] : memref<1x192xf32, #tpu.memory_space<vmem>>, vector<1x192xf32>
    %5 = vector.broadcast %4 : vector<1x192xf32> to vector<32x192xf32>
    %6 = arith.addf %3, %5 : vector<32x192xf32>
    %7 = tpu.transpose %6, [1, 0] : vector<32x192xf32> -> vector<192x32xf32>
    %8 = vector.extract_strided_slice %6 {offsets = [0, 0], sizes = [32, 8], strides = [1, 1]} : vector<32x192xf32> to vector<32x8xf32>
    %9 = vector.extract_strided_slice %7 {offsets = [64, 0], sizes = [8, 32], strides = [1, 1]} : vector<192x32xf32> to vector<8x32xf32>
    %cst_6 = arith.constant dense<0.000000e+00> : vector<32x32xf32>
    %10 = tpu.matmul %8, %9, %cst_6 {dimension_numbers = #tpu.dot_dimension_numbers<[1], [0], [0], [1], [0, 0, 1, 1], [], []>} : vector<32x8xf32>, vector<8x32xf32>, vector<32x32xf32> -> vector<32x32xf32>
    %11 = vector.extract_strided_slice %6 {offsets = [0, 8], sizes = [32, 8], strides = [1, 1]} : vector<32x192xf32> to vector<32x8xf32>
    %12 = vector.extract_strided_slice %7 {offsets = [72, 0], sizes = [8, 32], strides = [1, 1]} : vector<192x32xf32> to vector<8x32xf32>
    %cst_7 = arith.constant dense<0.000000e+00> : vector<32x32xf32>
    %13 = tpu.matmul %11, %12, %cst_7 {dimension_numbers = #tpu.dot_dimension_numbers<[1], [0], [0], [1], [0, 0, 1, 1], [], []>} : vector<32x8xf32>, vector<8x32xf32>, vector<32x32xf32> -> vector<32x32xf32>
    %14 = vector.extract_strided_slice %6 {offsets = [0, 16], sizes = [32, 8], strides = [1, 1]} : vector<32x192xf32> to vector<32x8xf32>
    %15 = vector.extract_strided_slice %7 {offsets = [80, 0], sizes = [8, 32], strides = [1, 1]} : vector<192x32xf32> to vector<8x32xf32>
    %cst_8 = arith.constant dense<0.000000e+00> : vector<32x32xf32>
    %16 = tpu.matmul %14, %15, %cst_8 {dimension_numbers = #tpu.dot_dimension_numbers<[1], [0], [0], [1], [0, 0, 1, 1], [], []>} : vector<32x8xf32>, vector<8x32xf32>, vector<32x32xf32> -> vector<32x32xf32>
    %17 = vector.extract_strided_slice %6 {offsets = [0, 24], sizes = [32, 8], strides = [1, 1]} : vector<32x192xf32> to vector<32x8xf32>
    %18 = vector.extract_strided_slice %7 {offsets = [88, 0], sizes = [8, 32], strides = [1, 1]} : vector<192x32xf32> to vector<8x32xf32>
    %cst_9 = arith.constant dense<0.000000e+00> : vector<32x32xf32>
    %19 = tpu.matmul %17, %18, %cst_9 {dimension_numbers = #tpu.dot_dimension_numbers<[1], [0], [0], [1], [0, 0, 1, 1], [], []>} : vector<32x8xf32>, vector<8x32xf32>, vector<32x32xf32> -> vector<32x32xf32>
    %20 = vector.extract_strided_slice %6 {offsets = [0, 32], sizes = [32, 8], strides = [1, 1]} : vector<32x192xf32> to vector<32x8xf32>
    %21 = vector.extract_strided_slice %7 {offsets = [96, 0], sizes = [8, 32], strides = [1, 1]} : vector<192x32xf32> to vector<8x32xf32>
    %cst_10 = arith.constant dense<0.000000e+00> : vector<32x32xf32>
    %22 = tpu.matmul %20, %21, %cst_10 {dimension_numbers = #tpu.dot_dimension_numbers<[1], [0], [0], [1], [0, 0, 1, 1], [], []>} : vector<32x8xf32>, vector<8x32xf32>, vector<32x32xf32> -> vector<32x32xf32>
    %23 = vector.extract_strided_slice %6 {offsets = [0, 40], sizes = [32, 8], strides = [1, 1]} : vector<32x192xf32> to vector<32x8xf32>
    %24 = vector.extract_strided_slice %7 {offsets = [104, 0], sizes = [8, 32], strides = [1, 1]} : vector<192x32xf32> to vector<8x32xf32>
    %cst_11 = arith.constant dense<0.000000e+00> : vector<32x32xf32>
    %25 = tpu.matmul %23, %24, %cst_11 {dimension_numbers = #tpu.dot_dimension_numbers<[1], [0], [0], [1], [0, 0, 1, 1], [], []>} : vector<32x8xf32>, vector<8x32xf32>, vector<32x32xf32> -> vector<32x32xf32>
    %26 = vector.extract_strided_slice %6 {offsets = [0, 48], sizes = [32, 8], strides = [1, 1]} : vector<32x192xf32> to vector<32x8xf32>
    %27 = vector.extract_strided_slice %7 {offsets = [112, 0], sizes = [8, 32], strides = [1, 1]} : vector<192x32xf32> to vector<8x32xf32>
    %cst_12 = arith.constant dense<0.000000e+00> : vector<32x32xf32>
    %28 = tpu.matmul %26, %27, %cst_12 {dimension_numbers = #tpu.dot_dimension_numbers<[1], [0], [0], [1], [0, 0, 1, 1], [], []>} : vector<32x8xf32>, vector<8x32xf32>, vector<32x32xf32> -> vector<32x32xf32>
    %29 = vector.extract_strided_slice %6 {offsets = [0, 56], sizes = [32, 8], strides = [1, 1]} : vector<32x192xf32> to vector<32x8xf32>
    %30 = vector.extract_strided_slice %7 {offsets = [120, 0], sizes = [8, 32], strides = [1, 1]} : vector<192x32xf32> to vector<8x32xf32>
    %cst_13 = arith.constant dense<0.000000e+00> : vector<32x32xf32>
    %31 = tpu.matmul %29, %30, %cst_13 {dimension_numbers = #tpu.dot_dimension_numbers<[1], [0], [0], [1], [0, 0, 1, 1], [], []>} : vector<32x8xf32>, vector<8x32xf32>, vector<32x32xf32> -> vector<32x32xf32>
    %32 = tpu.concatenate %10, %13, %16, %19, %22, %25, %28, %31 in 0 : vector<32x32xf32>, vector<32x32xf32>, vector<32x32xf32>, vector<32x32xf32>, vector<32x32xf32>, vector<32x32xf32>, vector<32x32xf32>, vector<32x32xf32> -> vector<256x32xf32>
    %c0_14 = arith.constant 0 : index
    %c0_15 = arith.constant 0 : index
    %33 = vector.load %arg2[%c0_14, %c0_15] : memref<256x32xf32, #tpu.memory_space<vmem>>, vector<256x32xf32>
    %34 = arith.addf %32, %33 : vector<256x32xf32>
    %cst_16 = arith.constant dense<0xFF800000> : vector<256xf32>
    %35 = vector.multi_reduction <maximumf>, %34, %cst_16 [1] : vector<256x32xf32> to vector<256xf32>
    %36 = vector.shape_cast %35 : vector<256xf32> to vector<256x1xf32>
    %37 = vector.broadcast %36 : vector<256x1xf32> to vector<256x32xf32>
    %38 = arith.subf %34, %37 : vector<256x32xf32>
    %39 = math.exp %38 : vector<256x32xf32>
    %cst_17 = arith.constant dense<0.000000e+00> : vector<256xf32>
    %40 = vector.multi_reduction <add>, %39, %cst_17 [1] : vector<256x32xf32> to vector<256xf32>
    %41 = vector.shape_cast %40 : vector<256xf32> to vector<256x1xf32>
    %42 = tpu.reciprocal %41 : vector<256x1xf32> -> vector<256x1xf32>
    %43 = vector.broadcast %42 : vector<256x1xf32> to vector<256x32xf32>
    %44 = arith.mulf %39, %43 : vector<256x32xf32>
    %45 = vector.extract_strided_slice %7 {offsets = [128, 0], sizes = [8, 32], strides = [1, 1]} : vector<192x32xf32> to vector<8x32xf32>
    %46 = vector.extract_strided_slice %44 {offsets = [0, 0], sizes = [32, 32], strides = [1, 1]} : vector<256x32xf32> to vector<32x32xf32>
    %cst_18 = arith.constant dense<0.000000e+00> : vector<8x32xf32>
    %47 = tpu.matmul %45, %46, %cst_18 {dimension_numbers = #tpu.dot_dimension_numbers<[1], [1], [0], [0], [0, 0, 1, 0], [], []>} : vector<8x32xf32>, vector<32x32xf32>, vector<8x32xf32> -> vector<8x32xf32>
    %48 = vector.extract_strided_slice %7 {offsets = [136, 0], sizes = [8, 32], strides = [1, 1]} : vector<192x32xf32> to vector<8x32xf32>
    %49 = vector.extract_strided_slice %44 {offsets = [32, 0], sizes = [32, 32], strides = [1, 1]} : vector<256x32xf32> to vector<32x32xf32>
    %cst_19 = arith.constant dense<0.000000e+00> : vector<8x32xf32>
    %50 = tpu.matmul %48, %49, %cst_19 {dimension_numbers = #tpu.dot_dimension_numbers<[1], [1], [0], [0], [0, 0, 1, 0], [], []>} : vector<8x32xf32>, vector<32x32xf32>, vector<8x32xf32> -> vector<8x32xf32>
    %51 = vector.extract_strided_slice %7 {offsets = [144, 0], sizes = [8, 32], strides = [1, 1]} : vector<192x32xf32> to vector<8x32xf32>
    %52 = vector.extract_strided_slice %44 {offsets = [64, 0], sizes = [32, 32], strides = [1, 1]} : vector<256x32xf32> to vector<32x32xf32>
    %cst_20 = arith.constant dense<0.000000e+00> : vector<8x32xf32>
    %53 = tpu.matmul %51, %52, %cst_20 {dimension_numbers = #tpu.dot_dimension_numbers<[1], [1], [0], [0], [0, 0, 1, 0], [], []>} : vector<8x32xf32>, vector<32x32xf32>, vector<8x32xf32> -> vector<8x32xf32>
    %54 = vector.extract_strided_slice %7 {offsets = [152, 0], sizes = [8, 32], strides = [1, 1]} : vector<192x32xf32> to vector<8x32xf32>
    %55 = vector.extract_strided_slice %44 {offsets = [96, 0], sizes = [32, 32], strides = [1, 1]} : vector<256x32xf32> to vector<32x32xf32>
    %cst_21 = arith.constant dense<0.000000e+00> : vector<8x32xf32>
    %56 = tpu.matmul %54, %55, %cst_21 {dimension_numbers = #tpu.dot_dimension_numbers<[1], [1], [0], [0], [0, 0, 1, 0], [], []>} : vector<8x32xf32>, vector<32x32xf32>, vector<8x32xf32> -> vector<8x32xf32>
    %57 = vector.extract_strided_slice %7 {offsets = [160, 0], sizes = [8, 32], strides = [1, 1]} : vector<192x32xf32> to vector<8x32xf32>
    %58 = vector.extract_strided_slice %44 {offsets = [128, 0], sizes = [32, 32], strides = [1, 1]} : vector<256x32xf32> to vector<32x32xf32>
    %cst_22 = arith.constant dense<0.000000e+00> : vector<8x32xf32>
    %59 = tpu.matmul %57, %58, %cst_22 {dimension_numbers = #tpu.dot_dimension_numbers<[1], [1], [0], [0], [0, 0, 1, 0], [], []>} : vector<8x32xf32>, vector<32x32xf32>, vector<8x32xf32> -> vector<8x32xf32>
    %60 = vector.extract_strided_slice %7 {offsets = [168, 0], sizes = [8, 32], strides = [1, 1]} : vector<192x32xf32> to vector<8x32xf32>
    %61 = vector.extract_strided_slice %44 {offsets = [160, 0], sizes = [32, 32], strides = [1, 1]} : vector<256x32xf32> to vector<32x32xf32>
    %cst_23 = arith.constant dense<0.000000e+00> : vector<8x32xf32>
    %62 = tpu.matmul %60, %61, %cst_23 {dimension_numbers = #tpu.dot_dimension_numbers<[1], [1], [0], [0], [0, 0, 1, 0], [], []>} : vector<8x32xf32>, vector<32x32xf32>, vector<8x32xf32> -> vector<8x32xf32>
    %63 = vector.extract_strided_slice %7 {offsets = [176, 0], sizes = [8, 32], strides = [1, 1]} : vector<192x32xf32> to vector<8x32xf32>
    %64 = vector.extract_strided_slice %44 {offsets = [192, 0], sizes = [32, 32], strides = [1, 1]} : vector<256x32xf32> to vector<32x32xf32>
    %cst_24 = arith.constant dense<0.000000e+00> : vector<8x32xf32>
    %65 = tpu.matmul %63, %64, %cst_24 {dimension_numbers = #tpu.dot_dimension_numbers<[1], [1], [0], [0], [0, 0, 1, 0], [], []>} : vector<8x32xf32>, vector<32x32xf32>, vector<8x32xf32> -> vector<8x32xf32>
    %66 = vector.extract_strided_slice %7 {offsets = [184, 0], sizes = [8, 32], strides = [1, 1]} : vector<192x32xf32> to vector<8x32xf32>
    %67 = vector.extract_strided_slice %44 {offsets = [224, 0], sizes = [32, 32], strides = [1, 1]} : vector<256x32xf32> to vector<32x32xf32>
    %cst_25 = arith.constant dense<0.000000e+00> : vector<8x32xf32>
    %68 = tpu.matmul %66, %67, %cst_25 {dimension_numbers = #tpu.dot_dimension_numbers<[1], [1], [0], [0], [0, 0, 1, 0], [], []>} : vector<8x32xf32>, vector<32x32xf32>, vector<8x32xf32> -> vector<8x32xf32>
    %69 = tpu.concatenate %47, %50, %53, %56, %59, %62, %65, %68 in 0 : vector<8x32xf32>, vector<8x32xf32>, vector<8x32xf32>, vector<8x32xf32>, vector<8x32xf32>, vector<8x32xf32>, vector<8x32xf32>, vector<8x32xf32> -> vector<64x32xf32>
    %70 = tpu.transpose %69, [1, 0] : vector<64x32xf32> -> vector<32x64xf32>
    %c0_26 = arith.constant 0 : index
    %c0_27 = arith.constant 0 : index
    %71 = vector.load %arg5[%c0_26, %c0_27] : memref<64x64xf32, #tpu.memory_space<vmem>>, vector<64x64xf32>
    %cst_28 = arith.constant dense<0.000000e+00> : vector<32x64xf32>
    %72 = tpu.matmul %70, %71, %cst_28 {dimension_numbers = #tpu.dot_dimension_numbers<[1], [0], [0], [1], [0, 0, 1, 1], [], []>} : vector<32x64xf32>, vector<64x64xf32>, vector<32x64xf32> -> vector<32x64xf32>
    %c0_29 = arith.constant 0 : index
    %c0_30 = arith.constant 0 : index
    %73 = vector.load %arg6[%c0_29, %c0_30] : memref<1x64xf32, #tpu.memory_space<vmem>>, vector<1x64xf32>
    %74 = vector.broadcast %73 : vector<1x64xf32> to vector<32x64xf32>
    %75 = arith.addf %72, %74 : vector<32x64xf32>
    %76 = arith.addf %1, %75 : vector<32x64xf32>
    %c0_31 = arith.constant 0 : index
    %c0_32 = arith.constant 0 : index
    %77 = vector.load %arg7[%c0_31, %c0_32] : memref<1x64xf32, #tpu.memory_space<vmem>>, vector<1x64xf32>
    %c0_33 = arith.constant 0 : index
    %c0_34 = arith.constant 0 : index
    %78 = vector.load %arg8[%c0_33, %c0_34] : memref<1x64xf32, #tpu.memory_space<vmem>>, vector<1x64xf32>
    %cst_35 = arith.constant dense<0.000000e+00> : vector<32xf32>
    %79 = vector.multi_reduction <add>, %76, %cst_35 [1] : vector<32x64xf32> to vector<32xf32>
    %80 = vector.shape_cast %79 : vector<32xf32> to vector<32x1xf32>
    %cst_36 = arith.constant 6.400000e+01 : f32
    %81 = vector.broadcast %cst_36 : f32 to vector<32x1xf32>
    %82 = arith.divf %80, %81 : vector<32x1xf32>
    %83 = vector.broadcast %82 : vector<32x1xf32> to vector<32x64xf32>
    %84 = arith.subf %76, %83 : vector<32x64xf32>
    %85 = arith.mulf %84, %84 : vector<32x64xf32>
    %cst_37 = arith.constant dense<0.000000e+00> : vector<32xf32>
    %86 = vector.multi_reduction <add>, %85, %cst_37 [1] : vector<32x64xf32> to vector<32xf32>
    %87 = vector.shape_cast %86 : vector<32xf32> to vector<32x1xf32>
    %cst_38 = arith.constant 6.400000e+01 : f32
    %88 = vector.broadcast %cst_38 : f32 to vector<32x1xf32>
    %89 = arith.divf %87, %88 : vector<32x1xf32>
    %90 = vector.broadcast %82 : vector<32x1xf32> to vector<32x64xf32>
    %91 = arith.subf %76, %90 : vector<32x64xf32>
    %cst_39 = arith.constant 9.99999974E-6 : f32
    %92 = vector.broadcast %cst_39 : f32 to vector<32x1xf32>
    %93 = arith.addf %89, %92 : vector<32x1xf32>
    %94 = math.rsqrt %93 : vector<32x1xf32>
    %95 = vector.broadcast %94 : vector<32x1xf32> to vector<32x64xf32>
    %96 = arith.mulf %91, %95 : vector<32x64xf32>
    %97 = vector.broadcast %77 : vector<1x64xf32> to vector<32x64xf32>
    %98 = arith.mulf %96, %97 : vector<32x64xf32>
    %99 = vector.broadcast %78 : vector<1x64xf32> to vector<32x64xf32>
    %100 = arith.addf %98, %99 : vector<32x64xf32>
    %c0_40 = arith.constant 0 : index
    %c0_41 = arith.constant 0 : index
    %101 = vector.load %arg9[%c0_40, %c0_41] : memref<64x128xf32, #tpu.memory_space<vmem>>, vector<64x128xf32>
    %cst_42 = arith.constant dense<0.000000e+00> : vector<32x128xf32>
    %102 = tpu.matmul %100, %101, %cst_42 {dimension_numbers = #tpu.dot_dimension_numbers<[1], [0], [0], [1], [0, 0, 1, 1], [], []>} : vector<32x64xf32>, vector<64x128xf32>, vector<32x128xf32> -> vector<32x128xf32>
    %c0_43 = arith.constant 0 : index
    %c0_44 = arith.constant 0 : index
    %103 = vector.load %arg10[%c0_43, %c0_44] : memref<1x128xf32, #tpu.memory_space<vmem>>, vector<1x128xf32>
    %104 = vector.broadcast %103 : vector<1x128xf32> to vector<32x128xf32>
    %105 = arith.addf %102, %104 : vector<32x128xf32>
    %cst_45 = arith.constant 0.000000e+00 : f32
    %106 = vector.broadcast %cst_45 : f32 to vector<32x128xf32>
    %107 = arith.maximumf %105, %106 : vector<32x128xf32>
    %c0_46 = arith.constant 0 : index
    %c0_47 = arith.constant 0 : index
    %108 = vector.load %arg11[%c0_46, %c0_47] : memref<128x64xf32, #tpu.memory_space<vmem>>, vector<128x64xf32>
    %cst_48 = arith.constant dense<0.000000e+00> : vector<32x64xf32>
    %109 = tpu.matmul %107, %108, %cst_48 {dimension_numbers = #tpu.dot_dimension_numbers<[1], [0], [0], [1], [0, 0, 1, 1], [], []>} : vector<32x128xf32>, vector<128x64xf32>, vector<32x64xf32> -> vector<32x64xf32>
    %c0_49 = arith.constant 0 : index
    %c0_50 = arith.constant 0 : index
    %110 = vector.load %arg12[%c0_49, %c0_50] : memref<1x64xf32, #tpu.memory_space<vmem>>, vector<1x64xf32>
    %111 = vector.broadcast %110 : vector<1x64xf32> to vector<32x64xf32>
    %112 = arith.addf %109, %111 : vector<32x64xf32>
    %113 = arith.addf %100, %112 : vector<32x64xf32>
    %c0_51 = arith.constant 0 : index
    %c0_52 = arith.constant 0 : index
    %114 = vector.load %arg13[%c0_51, %c0_52] : memref<1x64xf32, #tpu.memory_space<vmem>>, vector<1x64xf32>
    %c0_53 = arith.constant 0 : index
    %c0_54 = arith.constant 0 : index
    %115 = vector.load %arg14[%c0_53, %c0_54] : memref<1x64xf32, #tpu.memory_space<vmem>>, vector<1x64xf32>
    %cst_55 = arith.constant dense<0.000000e+00> : vector<32xf32>
    %116 = vector.multi_reduction <add>, %113, %cst_55 [1] : vector<32x64xf32> to vector<32xf32>
    %117 = vector.shape_cast %116 : vector<32xf32> to vector<32x1xf32>
    %cst_56 = arith.constant 6.400000e+01 : f32
    %118 = vector.broadcast %cst_56 : f32 to vector<32x1xf32>
    %119 = arith.divf %117, %118 : vector<32x1xf32>
    %120 = vector.broadcast %119 : vector<32x1xf32> to vector<32x64xf32>
    %121 = arith.subf %113, %120 : vector<32x64xf32>
    %122 = arith.mulf %121, %121 : vector<32x64xf32>
    %cst_57 = arith.constant dense<0.000000e+00> : vector<32xf32>
    %123 = vector.multi_reduction <add>, %122, %cst_57 [1] : vector<32x64xf32> to vector<32xf32>
    %124 = vector.shape_cast %123 : vector<32xf32> to vector<32x1xf32>
    %cst_58 = arith.constant 6.400000e+01 : f32
    %125 = vector.broadcast %cst_58 : f32 to vector<32x1xf32>
    %126 = arith.divf %124, %125 : vector<32x1xf32>
    %127 = vector.broadcast %119 : vector<32x1xf32> to vector<32x64xf32>
    %128 = arith.subf %113, %127 : vector<32x64xf32>
    %cst_59 = arith.constant 9.99999974E-6 : f32
    %129 = vector.broadcast %cst_59 : f32 to vector<32x1xf32>
    %130 = arith.addf %126, %129 : vector<32x1xf32>
    %131 = math.rsqrt %130 : vector<32x1xf32>
    %132 = vector.broadcast %131 : vector<32x1xf32> to vector<32x64xf32>
    %133 = arith.mulf %128, %132 : vector<32x64xf32>
    %134 = vector.broadcast %114 : vector<1x64xf32> to vector<32x64xf32>
    %135 = arith.mulf %133, %134 : vector<32x64xf32>
    %136 = vector.broadcast %115 : vector<1x64xf32> to vector<32x64xf32>
    %137 = arith.addf %135, %136 : vector<32x64xf32>
    %c0_60 = arith.constant 0 : index
    %c0_61 = arith.constant 0 : index
    %c0_62 = arith.constant 0 : index
    %138 = vector.load %arg15[%c0_60, %c0_61, %c0_62] : memref<1x32x64xf32, #tpu.memory_space<vmem>>, vector<1x32x64xf32>
    %139 = vector.shape_cast %138 : vector<1x32x64xf32> to vector<32x64xf32>
    %140 = vector.shape_cast %137 : vector<32x64xf32> to vector<1x32x64xf32>
    tpu.vector_store %arg15[%c0_60, %c0_61, %c0_62], %140 {strides = array<i32>} : memref<1x32x64xf32, #tpu.memory_space<vmem>>, vector<1x32x64xf32>,
    return
  }
  func.func @transform_0(%arg0: i32) -> (i32, i32, i32) {
    %c0_i32 = arith.constant 0 : i32
    %c0_i32_0 = arith.constant 0 : i32
    %c0_i32_1 = arith.constant 0 : i32
    return %arg0, %c0_i32, %c0_i32_0 : i32, i32, i32
  }
  func.func @transform_1(%arg0: i32) -> (i32, i32) {
    %c0_i32 = arith.constant 0 : i32
    %c0_i32_0 = arith.constant 0 : i32
    %c0_i32_1 = arith.constant 0 : i32
    return %c0_i32, %c0_i32_0 : i32, i32
  }
  func.func @transform_2(%arg0: i32) -> (i32, i32) {
    %c0_i32 = arith.constant 0 : i32
    %c0_i32_0 = arith.constant 0 : i32
    %c0_i32_1 = arith.constant 0 : i32
    return %c0_i32, %c0_i32_0 : i32, i32
  }
  func.func @transform_3(%arg0: i32) -> (i32, i32) {
    %c0_i32 = arith.constant 0 : i32
    %c0_i32_0 = arith.constant 0 : i32
    %c0_i32_1 = arith.constant 0 : i32
    return %c0_i32, %c0_i32_0 : i32, i32
  }
  func.func @transform_4(%arg0: i32) -> (i32, i32) {
    %c0_i32 = arith.constant 0 : i32
    %c0_i32_0 = arith.constant 0 : i32
    %c0_i32_1 = arith.constant 0 : i32
    return %c0_i32, %c0_i32_0 : i32, i32
  }
  func.func @transform_5(%arg0: i32) -> (i32, i32) {
    %c0_i32 = arith.constant 0 : i32
    %c0_i32_0 = arith.constant 0 : i32
    %c0_i32_1 = arith.constant 0 : i32
    return %c0_i32, %c0_i32_0 : i32, i32
  }
  func.func @transform_6(%arg0: i32) -> (i32, i32) {
    %c0_i32 = arith.constant 0 : i32
    %c0_i32_0 = arith.constant 0 : i32
    %c0_i32_1 = arith.constant 0 : i32
    return %c0_i32, %c0_i32_0 : i32, i32
  }
  func.func @transform_7(%arg0: i32) -> (i32, i32) {
    %c0_i32 = arith.constant 0 : i32
    %c0_i32_0 = arith.constant 0 : i32
    %c0_i32_1 = arith.constant 0 : i32
    return %c0_i32, %c0_i32_0 : i32, i32
  }
  func.func @transform_8(%arg0: i32) -> (i32, i32) {
    %c0_i32 = arith.constant 0 : i32
    %c0_i32_0 = arith.constant 0 : i32
    %c0_i32_1 = arith.constant 0 : i32
    return %c0_i32, %c0_i32_0 : i32, i32
  }
  func.func @transform_9(%arg0: i32) -> (i32, i32) {
    %c0_i32 = arith.constant 0 : i32
    %c0_i32_0 = arith.constant 0 : i32
    %c0_i32_1 = arith.constant 0 : i32
    return %c0_i32, %c0_i32_0 : i32, i32
  }
  func.func @transform_10(%arg0: i32) -> (i32, i32) {
    %c0_i32 = arith.constant 0 : i32
    %c0_i32_0 = arith.constant 0 : i32
    %c0_i32_1 = arith.constant 0 : i32
    return %c0_i32, %c0_i32_0 : i32, i32
  }
  func.func @transform_11(%arg0: i32) -> (i32, i32) {
    %c0_i32 = arith.constant 0 : i32
    %c0_i32_0 = arith.constant 0 : i32
    %c0_i32_1 = arith.constant 0 : i32
    return %c0_i32, %c0_i32_0 : i32, i32
  }
  func.func @transform_12(%arg0: i32) -> (i32, i32) {
    %c0_i32 = arith.constant 0 : i32
    %c0_i32_0 = arith.constant 0 : i32
    %c0_i32_1 = arith.constant 0 : i32
    return %c0_i32, %c0_i32_0 : i32, i32
  }
  func.func @transform_13(%arg0: i32) -> (i32, i32) {
    %c0_i32 = arith.constant 0 : i32
    %c0_i32_0 = arith.constant 0 : i32
    %c0_i32_1 = arith.constant 0 : i32
    return %c0_i32, %c0_i32_0 : i32, i32
  }
  func.func @transform_14(%arg0: i32) -> (i32, i32, i32) {
    %c0_i32 = arith.constant 0 : i32
    %c0_i32_0 = arith.constant 0 : i32
    %c0_i32_1 = arith.constant 0 : i32
    return %arg0, %c0_i32, %c0_i32_0 : i32, i32, i32
  }
}

</mosaic_0001>

<llo_original>
// kernel: tpu_custom_call.1
$region0: #{tpu_custom_call.1}
  #allocation0 [shape = 'u32[]', space=smem, size = 0x4, offset = 0x4, fixed_abs, tag = 'smem constant byte address 0x4 - core index']
  #allocation1 [shape = 'u32[72,128]{1,0:T(1,128)}', space=vmem, size = 0x9000, scoped, tag = 'internal scratch']
  %s0 = inlined_call_operand.vmem [shape: f32[2,32,64], index: 0, kind: input, shape index: {}]
  %s1 = inlined_call_operand.vmem [shape: f32[256,32], index: 1, kind: input, shape index: {}]
  %s2 = inlined_call_operand.vmem [shape: f32[64,192], index: 2, kind: input, shape index: {}]
  %s3 = inlined_call_operand.vmem [shape: f32[1,192], index: 3, kind: input, shape index: {}]
  %s4 = inlined_call_operand.vmem [shape: f32[64,64], index: 4, kind: input, shape index: {}]
  %s5 = inlined_call_operand.vmem [shape: f32[1,64], index: 5, kind: input, shape index: {}]
  %s6 = inlined_call_operand.vmem [shape: f32[1,64], index: 6, kind: input, shape index: {}]
  %s7 = inlined_call_operand.vmem [shape: f32[1,64], index: 7, kind: input, shape index: {}]
  %s8 = inlined_call_operand.vmem [shape: f32[64,128], index: 8, kind: input, shape index: {}]
  %s9 = inlined_call_operand.vmem [shape: f32[1,128], index: 9, kind: input, shape index: {}]
  %s10 = inlined_call_operand.vmem [shape: f32[128,64], index: 10, kind: input, shape index: {}]
  %s11 = inlined_call_operand.vmem [shape: f32[1,64], index: 11, kind: input, shape index: {}]
  %s12 = inlined_call_operand.vmem [shape: f32[1,64], index: 12, kind: input, shape index: {}]
  %s13 = inlined_call_operand.vmem [shape: f32[1,64], index: 13, kind: input, shape index: {}]
  %s14 = inlined_call_operand.hbm [shape: f32[2,32,64], index: 14, kind: output, shape index: {}]
  %s15 = sld [smem:[#allocation0]]
  $region89: #{tpu_custom_call.1} parent=0
    _
  %s17 = ssub.s32 1, %s15
  %s18 = scalar_select 0, %s17, %s15
  $region1: #{tpu_custom_call.1} parent=0
    #allocation2 [shape = 'u8[32768]{0}', space=vmem, size = 0x8000, scoped, tag = 'output window, operand 0']
    #allocation3 [shape = 's32[2]{0}', space=sflag, size = 0x8, scoped, tag = 'scoped memory for tpu_custom_call.1']
    %19 = vsyncpa [#allocation3], 0
    %s20 = scalar_lea.sflag [#allocation3], 1
    %21 = vsyncpa %s20, 0
    loop: start=0, step=1, limit=4
    $region2: #{tpu_custom_call.1} parent=1 // loop_pre_header
      _
    $region3: #{tpu_custom_call.1} parent=1 // loop_header
      %s23 = sphi 0, %s27
      %p24 = scmp.ge.s32.totalorder %s23, 4
      %s33 = sphi 0, %s35
      %s36 = sphi 0, %s33
      %s37 = sphi 0, %s36
      %s53 = sphi 0, %s37
      %s57 = sphi 0, %s57
      %s59 = sphi 0, %s57
      %s60 = sphi 0, %s59
      %s74 = sphi 0, %s60
      %s78 = sphi 0, %s78
      %s80 = sphi 0, %s78
      %s81 = sphi 0, %s80
      %s95 = sphi 0, %s81
      %s99 = sphi 0, %s99
      %s101 = sphi 0, %s99
      %s102 = sphi 0, %s101
      %s116 = sphi 0, %s102
      %s120 = sphi 0, %s120
      %s122 = sphi 0, %s120
      %s123 = sphi 0, %s122
      %s137 = sphi 0, %s123
      %s141 = sphi 0, %s141
      %s143 = sphi 0, %s141
      %s144 = sphi 0, %s143
      %s158 = sphi 0, %s144
      %s162 = sphi 0, %s162
      %s164 = sphi 0, %s162
      %s165 = sphi 0, %s164
      %s179 = sphi 0, %s165
      %s183 = sphi 0, %s183
      %s185 = sphi 0, %s183
      %s186 = sphi 0, %s185
      %s200 = sphi 0, %s186
      %s204 = sphi 0, %s204
      %s206 = sphi 0, %s204
      %s207 = sphi 0, %s206
      %s221 = sphi 0, %s207
      %s225 = sphi 0, %s225
      %s227 = sphi 0, %s225
      %s228 = sphi 0, %s227
      %s242 = sphi 0, %s228
      %s246 = sphi 0, %s246
      %s248 = sphi 0, %s246
      %s249 = sphi 0, %s248
      %s263 = sphi 0, %s249
      %s267 = sphi 0, %s267
      %s269 = sphi 0, %s267
      %s270 = sphi 0, %s269
      %s284 = sphi 0, %s270
      %s288 = sphi 0, %s288
      %s290 = sphi 0, %s288
      %s291 = sphi 0, %s290
      %s305 = sphi 0, %s291
      %s309 = sphi 0, %s309
      %s311 = sphi 0, %s309
      %s312 = sphi 0, %s311
      %s326 = sphi 0, %s312
      %s332 = sphi 0, %s334
      %s335 = sphi 0, %s332
      %s336 = sphi 0, %s335
      %s352 = sphi 0, %s336
    $region4: #{tpu_custom_call.1} parent=1 // loop_header_branch
      %26 = sbr.rel (%p24) target = $region8
    $region5: #{tpu_custom_call.1} parent=1 // loop_body
      %s28 = ssub.s32 %s23, 1
      %s29 = ssub.s32 %s23, 2
      %s30 = sadd.s32 %s23, 1
      %s31 = ssub.s32 %s23, %s30
      %p32 = scmp.eq.s32.totalorder %s31, 0
      %s34 = sadd.s32 %s33, 1
      %s35 = scalar_select %p32, %s33, %s34
      %p38 = pneg %p32
      %p39 = scmp.eq.s32.totalorder %s23, 1
      %p40 = por %p38, %p39
      %p41 = scmp.ne.s32.totalorder %s33, %s36
      %p42 = scmp.eq.s32.totalorder %s23, 0
      %p43 = por %p41, %p42
      %p44 = scmp.ne.s32.totalorder %s33, %s36
      %p45 = scmp.eq.s32.totalorder %s28, 1
      %p46 = por %p44, %p45
      %p47 = scmp.ne.s32.totalorder %s36, %s37
      %p48 = scmp.eq.s32.totalorder %s28, 0
      %p49 = por %p47, %p48
      %p50 = scmp.ne.s32.totalorder %s36, %s37
      %p51 = scmp.eq.s32.totalorder %s29, 1
      %p52 = por %p50, %p51
      %p54 = scmp.ne.s32.totalorder %s37, %s53
      %p55 = scmp.eq.s32.totalorder %s29, 0
      %p56 = por %p54, %p55
      %s58 = sadd.s32 %s57, 1
      %p61 = scmp.eq.s32.totalorder %s23, 1
      %p62 = scmp.ne.s32.totalorder %s57, %s59
      %p63 = scmp.eq.s32.totalorder %s23, 0
      %p64 = por %p62, %p63
      %p65 = scmp.ne.s32.totalorder %s57, %s59
      %p66 = scmp.eq.s32.totalorder %s28, 1
      %p67 = por %p65, %p66
      %p68 = scmp.ne.s32.totalorder %s59, %s60
      %p69 = scmp.eq.s32.totalorder %s28, 0
      %p70 = por %p68, %p69
      %p71 = scmp.ne.s32.totalorder %s59, %s60
      %p72 = scmp.eq.s32.totalorder %s29, 1
      %p73 = por %p71, %p72
      %p75 = scmp.ne.s32.totalorder %s60, %s74
      %p76 = scmp.eq.s32.totalorder %s29, 0
      %p77 = por %p75, %p76
      %s79 = sadd.s32 %s78, 1
      %p82 = scmp.eq.s32.totalorder %s23, 1
      %p83 = scmp.ne.s32.totalorder %s78, %s80
      %p84 = scmp.eq.s32.totalorder %s23, 0
      %p85 = por %p83, %p84
      %p86 = scmp.ne.s32.totalorder %s78, %s80
      %p87 = scmp.eq.s32.totalorder %s28, 1
      %p88 = por %p86, %p87
      %p89 = scmp.ne.s32.totalorder %s80, %s81
      %p90 = scmp.eq.s32.totalorder %s28, 0
      %p91 = por %p89, %p90
      %p92 = scmp.ne.s32.totalorder %s80, %s81
      %p93 = scmp.eq.s32.totalorder %s29, 1
      %p94 = por %p92, %p93
      %p96 = scmp.ne.s32.totalorder %s81, %s95
      %p97 = scmp.eq.s32.totalorder %s29, 0
      %p98 = por %p96, %p97
      %s100 = sadd.s32 %s99, 1
      %p103 = scmp.eq.s32.totalorder %s23, 1
      %p104 = scmp.ne.s32.totalorder %s99, %s101
      %p105 = scmp.eq.s32.totalorder %s23, 0
      %p106 = por %p104, %p105
      %p107 = scmp.ne.s32.totalorder %s99, %s101
      %p108 = scmp.eq.s32.totalorder %s28, 1
      %p109 = por %p107, %p108
      %p110 = scmp.ne.s32.totalorder %s101, %s102
      %p111 = scmp.eq.s32.totalorder %s28, 0
      %p112 = por %p110, %p111
      %p113 = scmp.ne.s32.totalorder %s101, %s102
      %p114 = scmp.eq.s32.totalorder %s29, 1
      %p115 = por %p113, %p114
      %p117 = scmp.ne.s32.totalorder %s102, %s116
      %p118 = scmp.eq.s32.totalorder %s29, 0
      %p119 = por %p117, %p118
      %s121 = sadd.s32 %s120, 1
      %p124 = scmp.eq.s32.totalorder %s23, 1
      %p125 = scmp.ne.s32.totalorder %s120, %s122
      %p126 = scmp.eq.s32.totalorder %s23, 0
      %p127 = por %p125, %p126
      %p128 = scmp.ne.s32.totalorder %s120, %s122
      %p129 = scmp.eq.s32.totalorder %s28, 1
      %p130 = por %p128, %p129
      %p131 = scmp.ne.s32.totalorder %s122, %s123
      %p132 = scmp.eq.s32.totalorder %s28, 0
      %p133 = por %p131, %p132
      %p134 = scmp.ne.s32.totalorder %s122, %s123
      %p135 = scmp.eq.s32.totalorder %s29, 1
      %p136 = por %p134, %p135
      %p138 = scmp.ne.s32.totalorder %s123, %s137
      %p139 = scmp.eq.s32.totalorder %s29, 0
      %p140 = por %p138, %p139
      %s142 = sadd.s32 %s141, 1
      %p145 = scmp.eq.s32.totalorder %s23, 1
      %p146 = scmp.ne.s32.totalorder %s141, %s143
      %p147 = scmp.eq.s32.totalorder %s23, 0
      %p148 = por %p146, %p147
      %p149 = scmp.ne.s32.totalorder %s141, %s143
      %p150 = scmp.eq.s32.totalorder %s28, 1
      %p151 = por %p149, %p150
      %p152 = scmp.ne.s32.totalorder %s143, %s144
      %p153 = scmp.eq.s32.totalorder %s28, 0
      %p154 = por %p152, %p153
      %p155 = scmp.ne.s32.totalorder %s143, %s144
      %p156 = scmp.eq.s32.totalorder %s29, 1
      %p157 = por %p155, %p156
      %p159 = scmp.ne.s32.totalorder %s144, %s158
      %p160 = scmp.eq.s32.totalorder %s29, 0
      %p161 = por %p159, %p160
      %s163 = sadd.s32 %s162, 1
      %p166 = scmp.eq.s32.totalorder %s23, 1
      %p167 = scmp.ne.s32.totalorder %s162, %s164
      %p168 = scmp.eq.s32.totalorder %s23, 0
      %p169 = por %p167, %p168
      %p170 = scmp.ne.s32.totalorder %s162, %s164
      %p171 = scmp.eq.s32.totalorder %s28, 1
      %p172 = por %p170, %p171
      %p173 = scmp.ne.s32.totalorder %s164, %s165
      %p174 = scmp.eq.s32.totalorder %s28, 0
      %p175 = por %p173, %p174
      %p176 = scmp.ne.s32.totalorder %s164, %s165
      %p177 = scmp.eq.s32.totalorder %s29, 1
      %p178 = por %p176, %p177
      %p180 = scmp.ne.s32.totalorder %s165, %s179
      %p181 = scmp.eq.s32.totalorder %s29, 0
      %p182 = por %p180, %p181
      %s184 = sadd.s32 %s183, 1
      %p187 = scmp.eq.s32.totalorder %s23, 1
      %p188 = scmp.ne.s32.totalorder %s183, %s185
      %p189 = scmp.eq.s32.totalorder %s23, 0
      %p190 = por %p188, %p189
      %p191 = scmp.ne.s32.totalorder %s183, %s185
      %p192 = scmp.eq.s32.totalorder %s28, 1
      %p193 = por %p191, %p192
      %p194 = scmp.ne.s32.totalorder %s185, %s186
      %p195 = scmp.eq.s32.totalorder %s28, 0
      %p196 = por %p194, %p195
      %p197 = scmp.ne.s32.totalorder %s185, %s186
      %p198 = scmp.eq.s32.totalorder %s29, 1
      %p199 = por %p197, %p198
      %p201 = scmp.ne.s32.totalorder %s186, %s200
      %p202 = scmp.eq.s32.totalorder %s29, 0
      %p203 = por %p201, %p202
      %s205 = sadd.s32 %s204, 1
      %p208 = scmp.eq.s32.totalorder %s23, 1
      %p209 = scmp.ne.s32.totalorder %s204, %s206
      %p210 = scmp.eq.s32.totalorder %s23, 0
      %p211 = por %p209, %p210
      %p212 = scmp.ne.s32.totalorder %s204, %s206
      %p213 = scmp.eq.s32.totalorder %s28, 1
      %p214 = por %p212, %p213
      %p215 = scmp.ne.s32.totalorder %s206, %s207
      %p216 = scmp.eq.s32.totalorder %s28, 0
      %p217 = por %p215, %p216
      %p218 = scmp.ne.s32.totalorder %s206, %s207
      %p219 = scmp.eq.s32.totalorder %s29, 1
      %p220 = por %p218, %p219
      %p222 = scmp.ne.s32.totalorder %s207, %s221
      %p223 = scmp.eq.s32.totalorder %s29, 0
      %p224 = por %p222, %p223
      %s226 = sadd.s32 %s225, 1
      %p229 = scmp.eq.s32.totalorder %s23, 1
      %p230 = scmp.ne.s32.totalorder %s225, %s227
      %p231 = scmp.eq.s32.totalorder %s23, 0
      %p232 = por %p230, %p231
      %p233 = scmp.ne.s32.totalorder %s225, %s227
      %p234 = scmp.eq.s32.totalorder %s28, 1
      %p235 = por %p233, %p234
      %p236 = scmp.ne.s32.totalorder %s227, %s228
      %p237 = scmp.eq.s32.totalorder %s28, 0
      %p238 = por %p236, %p237
      %p239 = scmp.ne.s32.totalorder %s227, %s228
      %p240 = scmp.eq.s32.totalorder %s29, 1
      %p241 = por %p239, %p240
      %p243 = scmp.ne.s32.totalorder %s228, %s242
      %p244 = scmp.eq.s32.totalorder %s29, 0
      %p245 = por %p243, %p244
      %s247 = sadd.s32 %s246, 1
      %p250 = scmp.eq.s32.totalorder %s23, 1
      %p251 = scmp.ne.s32.totalorder %s246, %s248
      %p252 = scmp.eq.s32.totalorder %s23, 0
      %p253 = por %p251, %p252
      %p254 = scmp.ne.s32.totalorder %s246, %s248
      %p255 = scmp.eq.s32.totalorder %s28, 1
      %p256 = por %p254, %p255
      %p257 = scmp.ne.s32.totalorder %s248, %s249
      %p258 = scmp.eq.s32.totalorder %s28, 0
      %p259 = por %p257, %p258
      %p260 = scmp.ne.s32.totalorder %s248, %s249
      %p261 = scmp.eq.s32.totalorder %s29, 1
      %p262 = por %p260, %p261
      %p264 = scmp.ne.s32.totalorder %s249, %s263
      %p265 = scmp.eq.s32.totalorder %s29, 0
      %p266 = por %p264, %p265
      %s268 = sadd.s32 %s267, 1
      %p271 = scmp.eq.s32.totalorder %s23, 1
      %p272 = scmp.ne.s32.totalorder %s267, %s269
      %p273 = scmp.eq.s32.totalorder %s23, 0
      %p274 = por %p272, %p273
      %p275 = scmp.ne.s32.totalorder %s267, %s269
      %p276 = scmp.eq.s32.totalorder %s28, 1
      %p277 = por %p275, %p276
      %p278 = scmp.ne.s32.totalorder %s269, %s270
      %p279 = scmp.eq.s32.totalorder %s28, 0
      %p280 = por %p278, %p279
      %p281 = scmp.ne.s32.totalorder %s269, %s270
      %p282 = scmp.eq.s32.totalorder %s29, 1
      %p283 = por %p281, %p282
      %p285 = scmp.ne.s32.totalorder %s270, %s284
      %p286 = scmp.eq.s32.totalorder %s29, 0
      %p287 = por %p285, %p286
      %s289 = sadd.s32 %s288, 1
      %p292 = scmp.eq.s32.totalorder %s23, 1
      %p293 = scmp.ne.s32.totalorder %s288, %s290
      %p294 = scmp.eq.s32.totalorder %s23, 0
      %p295 = por %p293, %p294
      %p296 = scmp.ne.s32.totalorder %s288, %s290
      %p297 = scmp.eq.s32.totalorder %s28, 1
      %p298 = por %p296, %p297
      %p299 = scmp.ne.s32.totalorder %s290, %s291
      %p300 = scmp.eq.s32.totalorder %s28, 0
      %p301 = por %p299, %p300
      %p302 = scmp.ne.s32.totalorder %s290, %s291
      %p303 = scmp.eq.s32.totalorder %s29, 1
      %p304 = por %p302, %p303
      %p306 = scmp.ne.s32.totalorder %s291, %s305
      %p307 = scmp.eq.s32.totalorder %s29, 0
      %p308 = por %p306, %p307
      %s310 = sadd.s32 %s309, 1
      %p313 = scmp.eq.s32.totalorder %s23, 1
      %p314 = scmp.ne.s32.totalorder %s309, %s311
      %p315 = scmp.eq.s32.totalorder %s23, 0
      %p316 = por %p314, %p315
      %p317 = scmp.ne.s32.totalorder %s309, %s311
      %p318 = scmp.eq.s32.totalorder %s28, 1
      %p319 = por %p317, %p318
      %p320 = scmp.ne.s32.totalorder %s311, %s312
      %p321 = scmp.eq.s32.totalorder %s28, 0
      %p322 = por %p320, %p321
      %p323 = scmp.ne.s32.totalorder %s311, %s312
      %p324 = scmp.eq.s32.totalorder %s29, 1
      %p325 = por %p323, %p324
      %p327 = scmp.ne.s32.totalorder %s312, %s326
      %p328 = scmp.eq.s32.totalorder %s29, 0
      %p329 = por %p327, %p328
      %s330 = ssub.s32 %s23, %s30
      %p331 = scmp.eq.s32.totalorder %s330, 0
      %s333 = sadd.s32 %s332, 1
      %s334 = scalar_select %p331, %s332, %s333
      %p337 = pneg %p331
      %p338 = scmp.eq.s32.totalorder %s23, 1
      %p339 = por %p337, %p338
      %p340 = scmp.ne.s32.totalorder %s332, %s335
      %p341 = scmp.eq.s32.totalorder %s23, 0
      %p342 = por %p340, %p341
      %p343 = scmp.ne.s32.totalorder %s332, %s335
      %p344 = scmp.eq.s32.totalorder %s28, 1
      %p345 = por %p343, %p344
      %p346 = scmp.ne.s32.totalorder %s335, %s336
      %p347 = scmp.eq.s32.totalorder %s28, 0
      %p348 = por %p346, %p347
      %p349 = scmp.ne.s32.totalorder %s335, %s336
      %p350 = scmp.eq.s32.totalorder %s29, 1
      %p351 = por %p349, %p350
      %p353 = scmp.ne.s32.totalorder %s336, %s352
      %p354 = scmp.eq.s32.totalorder %s29, 0
      %p355 = por %p353, %p354
      %p356 = scmp.le.s32.totalorder 1, %s23
      %p357 = scmp.lt.s32.totalorder %s23, 3
      %p358 = pnand %p356, %p357
      %p359 = pneg %p358
      // Predicated region
      $region9: #{tpu_custom_call.1} parent=5 // pred_check
        _
      $region10: #{tpu_custom_call.1} parent=5 // pred_check_branch
        %361 = sbr.rel (%p358) target = $region12
      $region11: #{tpu_custom_call.1} parent=5 // pred_region
        %s362 = ssub.s32 %s23, 1
        // Predicated region
        $region13: #{tpu_custom_call.1} parent=11 // pred_check
          %p363 = pneg %p70
        $region14: #{tpu_custom_call.1} parent=11 // pred_check_branch
          %365 = sbr.rel (%p363) target = $region16
        $region15: #{tpu_custom_call.1} parent=11 // pred_region
          _
        $region16: #{tpu_custom_call.1} parent=11 // pred_fallthru
          _
        // Predicated region
        $region17: #{tpu_custom_call.1} parent=11 // pred_check
          %p366 = pneg %p91
        $region18: #{tpu_custom_call.1} parent=11 // pred_check_branch
          %368 = sbr.rel (%p366) target = $region20
        $region19: #{tpu_custom_call.1} parent=11 // pred_region
          _
        $region20: #{tpu_custom_call.1} parent=11 // pred_fallthru
          _
        // Predicated region
        $region21: #{tpu_custom_call.1} parent=11 // pred_check
          %p369 = pneg %p112
        $region22: #{tpu_custom_call.1} parent=11 // pred_check_branch
          %371 = sbr.rel (%p369) target = $region24
        $region23: #{tpu_custom_call.1} parent=11 // pred_region
          _
        $region24: #{tpu_custom_call.1} parent=11 // pred_fallthru
          _
        // Predicated region
        $region25: #{tpu_custom_call.1} parent=11 // pred_check
          %p372 = pneg %p133
        $region26: #{tpu_custom_call.1} parent=11 // pred_check_branch
          %374 = sbr.rel (%p372) target = $region28
        $region27: #{tpu_custom_call.1} parent=11 // pred_region
          _
        $region28: #{tpu_custom_call.1} parent=11 // pred_fallthru
          _
        // Predicated region
        $region29: #{tpu_custom_call.1} parent=11 // pred_check
          %p375 = pneg %p154
        $region30: #{tpu_custom_call.1} parent=11 // pred_check_branch
          %377 = sbr.rel (%p375) target = $region32
        $region31: #{tpu_custom_call.1} parent=11 // pred_region
          _
        $region32: #{tpu_custom_call.1} parent=11 // pred_fallthru
          _
        // Predicated region
        $region33: #{tpu_custom_call.1} parent=11 // pred_check
          %p378 = pneg %p175
        $region34: #{tpu_custom_call.1} parent=11 // pred_check_branch
          %380 = sbr.rel (%p378) target = $region36
        $region35: #{tpu_custom_call.1} parent=11 // pred_region
          _
        $region36: #{tpu_custom_call.1} parent=11 // pred_fallthru
          _
        // Predicated region
        $region37: #{tpu_custom_call.1} parent=11 // pred_check
          %p381 = pneg %p196
        $region38: #{tpu_custom_call.1} parent=11 // pred_check_branch
          %383 = sbr.rel (%p381) target = $region40
        $region39: #{tpu_custom_call.1} parent=11 // pred_region
          _
        $region40: #{tpu_custom_call.1} parent=11 // pred_fallthru
          _
        // Predicated region
        $region41: #{tpu_custom_call.1} parent=11 // pred_check
          %p384 = pneg %p217
        $region42: #{tpu_custom_call.1} parent=11 // pred_check_branch
          %386 = sbr.rel (%p384) target = $region44
        $region43: #{tpu_custom_call.1} parent=11 // pred_region
          _
        $region44: #{tpu_custom_call.1} parent=11 // pred_fallthru
          _
        // Predicated region
        $region45: #{tpu_custom_call.1} parent=11 // pred_check
          %p387 = pneg %p238
        $region46: #{tpu_custom_call.1} parent=11 // pred_check_branch
          %389 = sbr.rel (%p387) target = $region48
        $region47: #{tpu_custom_call.1} parent=11 // pred_region
          _
        $region48: #{tpu_custom_call.1} parent=11 // pred_fallthru
          _
        // Predicated region
        $region49: #{tpu_custom_call.1} parent=11 // pred_check
          %p390 = pneg %p259
        $region50: #{tpu_custom_call.1} parent=11 // pred_check_branch
          %392 = sbr.rel (%p390) target = $region52
        $region51: #{tpu_custom_call.1} parent=11 // pred_region
          _
        $region52: #{tpu_custom_call.1} parent=11 // pred_fallthru
          _
        // Predicated region
        $region53: #{tpu_custom_call.1} parent=11 // pred_check
          %p393 = pneg %p280
        $region54: #{tpu_custom_call.1} parent=11 // pred_check_branch
          %395 = sbr.rel (%p393) target = $region56
        $region55: #{tpu_custom_call.1} parent=11 // pred_region
          _
        $region56: #{tpu_custom_call.1} parent=11 // pred_fallthru
          _
        // Predicated region
        $region57: #{tpu_custom_call.1} parent=11 // pred_check
          %p396 = pneg %p301
        $region58: #{tpu_custom_call.1} parent=11 // pred_check_branch
          %398 = sbr.rel (%p396) target = $region60
        $region59: #{tpu_custom_call.1} parent=11 // pred_region
          _
        $region60: #{tpu_custom_call.1} parent=11 // pred_fallthru
          _
        // Predicated region
        $region61: #{tpu_custom_call.1} parent=11 // pred_check
          %p399 = pneg %p322
        $region62: #{tpu_custom_call.1} parent=11 // pred_check_branch
          %401 = sbr.rel (%p399) target = $region64
        $region63: #{tpu_custom_call.1} parent=11 // pred_region
          _
        $region64: #{tpu_custom_call.1} parent=11 // pred_fallthru
          _
      $region12: #{tpu_custom_call.1} parent=5 // pred_fallthru
        _
      %p402 = scmp.lt.s32.totalorder %s23, 2
      // Predicated region
      $region65: #{tpu_custom_call.1} parent=5 // pred_check
        %p403 = pneg %p402
      $region66: #{tpu_custom_call.1} parent=5 // pred_check_branch
        %405 = sbr.rel (%p403) target = $region68
      $region67: #{tpu_custom_call.1} parent=5 // pred_region
        // Predicated region
        $region69: #{tpu_custom_call.1} parent=67 // pred_check
          %p406 = pneg %p43
        $region70: #{tpu_custom_call.1} parent=67 // pred_check_branch
          %408 = sbr.rel (%p406) target = $region72
        $region71: #{tpu_custom_call.1} parent=67 // pred_region
          %p409 = scmp.lt.s32.totalorder %s23, 1
          %s410 = scalar_select %p409, %s23, 1
          %s411 = smul.addr %s410, 4
          %s412 = smul.addr %s411, 8
          %s413 = scalar_lea.vmem %s0, %s412
        $region72: #{tpu_custom_call.1} parent=67 // pred_fallthru
          _
      $region68: #{tpu_custom_call.1} parent=5 // pred_fallthru
        _
      %p414 = scmp.le.s32.totalorder 1, %s23
      %p415 = scmp.lt.s32.totalorder %s23, 3
      %p416 = pnand %p414, %p415
      %p417 = pneg %p416
      // Predicated region
      $region73: #{tpu_custom_call.1} parent=5 // pred_check
        _
      $region74: #{tpu_custom_call.1} parent=5 // pred_check_branch
        %419 = sbr.rel (%p416) target = $region76
      $region75: #{tpu_custom_call.1} parent=5 // pred_region
        %s420 = ssub.s32 %s23, 1
        %p421 = scmp.lt.s32.totalorder %s28, 1
        %s422 = scalar_select %p421, %s28, 1
        %s423 = smul.addr %s422, 4
        %s424 = smul.addr %s423, 8
        %s425 = scalar_lea.vmem %s0, %s424
        %p426 = pneg %p49
        %p427 = pneg %p46
        %p428 = pneg %p70
        %p429 = pneg %p67
        %p430 = pneg %p91
        %p431 = pneg %p88
        %p432 = pneg %p112
        %p433 = pneg %p109
        %p434 = pneg %p133
        %p435 = pneg %p130
        %p436 = pneg %p154
        %p437 = pneg %p151
        %p438 = pneg %p175
        %p439 = pneg %p172
        %p440 = pneg %p196
        %p441 = pneg %p193
        %p442 = pneg %p217
        %p443 = pneg %p214
        %p444 = pneg %p238
        %p445 = pneg %p235
        %p446 = pneg %p259
        %p447 = pneg %p256
        %p448 = pneg %p280
        %p449 = pneg %p277
        %p450 = pneg %p301
        %p451 = pneg %p298
        %p452 = pneg %p322
        %p453 = pneg %p319
        %p454 = pneg %p348
        %p455 = pneg %p345
        %s456 = sand.u32 %s335, 1
        %s457 = scalar_lea.sflag [#allocation3], %s456
        %s458 = sand.u32 %s335, 1
        %s459 = smul.addr %s458, 32
        %s460 = scalar_lea.vmem [#allocation2], %s459
        %p461 = scmp.lt.s32.totalorder %s28, 1
        %s462 = scalar_select %p461, %s28, 1
        %s463 = smul.addr %s462, 4
        %s464 = smul.addr %s463, 8
        %s465 = scalar_lea.vmem %s0, %s464
        %v466 = vld [vmem:[%s465] sm:$0xff]
        %v467 = vld [vmem:[%s465 + $0x8] sm:$0xff]
        %v468 = vld [vmem:[%s465 + $0x10] sm:$0xff]
        %v469 = vld [vmem:[%s465 + $0x18] sm:$0xff]
        %v470 = vld [vmem:[%s2] sm:$0xff]
        %v471 = vld [vmem:[%s2 + $0x8] sm:$0xff]
        %v472 = vld [vmem:[%s2 + $0x10] sm:$0xff]
        %v473 = vld [vmem:[%s2 + $0x18] sm:$0xff]
        %v474 = vld [vmem:[%s2 + $0x20] sm:$0xff]
        %v475 = vld [vmem:[%s2 + $0x28] sm:$0xff]
        %v476 = vld [vmem:[%s2 + $0x30] sm:$0xff]
        %v477 = vld [vmem:[%s2 + $0x38] sm:$0xff]
        %v478 = vld [vmem:[%s2 + $0x40] sm:$0xff]
        %v479 = vld [vmem:[%s2 + $0x48] sm:$0xff]
        %v480 = vld [vmem:[%s2 + $0x50] sm:$0xff]
        %v481 = vld [vmem:[%s2 + $0x58] sm:$0xff]
        %v482 = vld [vmem:[%s2 + $0x60] sm:$0xff]
        %v483 = vld [vmem:[%s2 + $0x68] sm:$0xff]
        %v484 = vld [vmem:[%s2 + $0x70] sm:$0xff]
        %v485 = vld [vmem:[%s2 + $0x78] sm:$0xff]
        %v486 = vld [vmem:[%s3] sm:$0x3]
        %v488 = vperm.slane %v486, 0
        %v489 = vperm.slane %v486, 1
        %vm492 = vcmask 523264
        %v494 = vsel %vm492, %v466, 0
        %v497 = vsel %vm492, %v467, 0
        %v500 = vsel %vm492, %v468, 0
        %v503 = vsel %vm492, %v469, 0
        %505 = vmatpush.msra.mxu0 0.0
        %506 = vmatpush.msra.mxu0 0.0
        %507 = vmatpush.msra.mxu0 0.0
        %508 = vmatpush.msra.mxu0 0.0
        %509 = vmatpush.msra.mxu0 0.0
        %510 = vmatpush.msra.mxu0 0.0
        %511 = vmatpush.msra.mxu0 0.0
        %512 = vmatpush.msra.mxu0 0.0
        %513 = vmatpush.msra.mxu0 %v484
        %514 = vmatpush.msra.mxu0 %v482
        %515 = vmatpush.msra.mxu0 %v480
        %516 = vmatpush.msra.mxu0 %v478
        %517 = vmatpush.msra.mxu0 %v476
        %518 = vmatpush.msra.mxu0 %v474
        %519 = vmatpush.msra.mxu0 %v472
        %520 = vmatpush.msra.mxu0 %v470
        %521 = vmatmul.f32.gmra.mxu0 %v494
        %v522 = vpop.f32.mrf.mxu0
        %v523 = vadd.f32 %v488, %v522
        %524 = vmatmul.f32.gmra.mxu0 %v497
        %v525 = vpop.f32.mrf.mxu0
        %v526 = vadd.f32 %v488, %v525
        %527 = vmatmul.f32.gmra.mxu0 %v500
        %v528 = vpop.f32.mrf.mxu0
        %v529 = vadd.f32 %v488, %v528
        %530 = vmatmul.f32.gmra.mxu0 %v503
        %v531 = vpop.f32.mrf.mxu0
        %v532 = vadd.f32 %v488, %v531
        %533 = vdwg.mxu0
        %534 = vmatpush.msra.mxu0 0.0
        %535 = vmatpush.msra.mxu0 0.0
        %536 = vmatpush.msra.mxu0 0.0
        %537 = vmatpush.msra.mxu0 0.0
        %538 = vmatpush.msra.mxu0 0.0
        %539 = vmatpush.msra.mxu0 0.0
        %540 = vmatpush.msra.mxu0 0.0
        %541 = vmatpush.msra.mxu0 0.0
        %542 = vmatpush.msra.mxu0 %v485
        %543 = vmatpush.msra.mxu0 %v483
        %544 = vmatpush.msra.mxu0 %v481
        %545 = vmatpush.msra.mxu0 %v479
        %546 = vmatpush.msra.mxu0 %v477
        %547 = vmatpush.msra.mxu0 %v475
        %548 = vmatpush.msra.mxu0 %v473
        %549 = vmatpush.msra.mxu0 %v471
        %550 = vmatmul.f32.gmra.mxu0 %v494
        %v551 = vpop.f32.mrf.mxu0
        %v552 = vadd.f32 %v489, %v551
        %553 = vmatmul.f32.gmra.mxu0 %v497
        %v554 = vpop.f32.mrf.mxu0
        %v555 = vadd.f32 %v489, %v554
        %556 = vmatmul.f32.gmra.mxu0 %v500
        %v557 = vpop.f32.mrf.mxu0
        %v558 = vadd.f32 %v489, %v557
        %559 = vmatmul.f32.gmra.mxu0 %v503
        %v560 = vpop.f32.mrf.mxu0
        %v561 = vadd.f32 %v489, %v560
        %562 = vdwg.mxu0
        %563 = vxpose.xlu0.b32.start [1/16] %v523, 128
        %564 = vxpose.xlu0.b32.cont [2/16] %v526, 128
        %565 = vxpose.xlu0.b32.cont [3/16] %v529, 128
        %566 = vxpose.xlu0.b32.cont [4/16] %v532, 128
        %567 = vxpose.xlu0.b32.cont [5/16] 0.0, 128
        %568 = vxpose.xlu0.b32.cont [6/16] 0.0, 128
        %569 = vxpose.xlu0.b32.cont [7/16] 0.0, 128
        %570 = vxpose.xlu0.b32.cont [8/16] 0.0, 128
        %571 = vxpose.xlu0.b32.cont [9/16] 0.0, 128
        %572 = vxpose.xlu0.b32.cont [10/16] 0.0, 128
        %573 = vxpose.xlu0.b32.cont [11/16] 0.0, 128
        %574 = vxpose.xlu0.b32.cont [12/16] 0.0, 128
        %575 = vxpose.xlu0.b32.cont [13/16] 0.0, 128
        %576 = vxpose.xlu0.b32.cont [14/16] 0.0, 128
        %577 = vxpose.xlu0.b32.cont [15/16] 0.0, 128
        %578 = vxpose.xlu0.b32.end [16/16] 0.0, 128
        %v579 = vpop.trf.xlu0
        %v580 = vpop.trf.xlu0
        %v581 = vpop.trf.xlu0
        %v582 = vpop.trf.xlu0
        %v583 = vpop.trf.xlu0
        %v584 = vpop.trf.xlu0
        %v585 = vpop.trf.xlu0
        %v586 = vpop.trf.xlu0
        %v587 = vpop.trf.xlu0
        %v588 = vpop.trf.xlu0
        %v589 = vpop.trf.xlu0
        %v590 = vpop.trf.xlu0
        %v591 = vpop.trf.xlu0
        %v592 = vpop.trf.xlu0
        %v593 = vpop.trf.xlu0
        %v594 = vpop.trf.xlu0
        %595 = vxpose.xlu0.b32.start [1/16] %v552, 128
        %596 = vxpose.xlu0.b32.cont [2/16] %v555, 128
        %597 = vxpose.xlu0.b32.cont [3/16] %v558, 128
        %598 = vxpose.xlu0.b32.cont [4/16] %v561, 128
        %599 = vxpose.xlu0.b32.cont [5/16] 0.0, 128
        %600 = vxpose.xlu0.b32.cont [6/16] 0.0, 128
        %601 = vxpose.xlu0.b32.cont [7/16] 0.0, 128
        %602 = vxpose.xlu0.b32.cont [8/16] 0.0, 128
        %603 = vxpose.xlu0.b32.cont [9/16] 0.0, 128
        %604 = vxpose.xlu0.b32.cont [10/16] 0.0, 128
        %605 = vxpose.xlu0.b32.cont [11/16] 0.0, 128
        %606 = vxpose.xlu0.b32.cont [12/16] 0.0, 128
        %607 = vxpose.xlu0.b32.cont [13/16] 0.0, 128
        %608 = vxpose.xlu0.b32.cont [14/16] 0.0, 128
        %609 = vxpose.xlu0.b32.cont [15/16] 0.0, 128
        %610 = vxpose.xlu0.b32.end [16/16] 0.0, 128
        %v611 = vpop.trf.xlu0
        %v612 = vpop.trf.xlu0
        %v613 = vpop.trf.xlu0
        %v614 = vpop.trf.xlu0
        %v615 = vpop.trf.xlu0
        %v616 = vpop.trf.xlu0
        %v617 = vpop.trf.xlu0
        %v618 = vpop.trf.xlu0
        %v619 = vpop.trf.xlu0
        %v620 = vpop.trf.xlu0
        %v621 = vpop.trf.xlu0
        %v622 = vpop.trf.xlu0
        %v623 = vpop.trf.xlu0
        %v624 = vpop.trf.xlu0
        %v625 = vpop.trf.xlu0
        %v626 = vpop.trf.xlu0
        %vm627 = vcmask 64512
        %v629 = vsel %vm627, %v523, 0
        %v632 = vsel %vm627, %v526, 0
        %v635 = vsel %vm627, %v529, 0
        %v638 = vsel %vm627, %v532, 0
        %640 = vmatpush.msra.mxu0 0.0
        %641 = vmatpush.msra.mxu0 0.0
        %642 = vmatpush.msra.mxu0 0.0
        %643 = vmatpush.msra.mxu0 0.0
        %644 = vmatpush.msra.mxu0 0.0
        %645 = vmatpush.msra.mxu0 0.0
        %646 = vmatpush.msra.mxu0 0.0
        %647 = vmatpush.msra.mxu0 0.0
        %648 = vmatpush.msra.mxu0 0.0
        %649 = vmatpush.msra.mxu0 0.0
        %650 = vmatpush.msra.mxu0 0.0
        %651 = vmatpush.msra.mxu0 0.0
        %652 = vmatpush.msra.mxu0 0.0
        %653 = vmatpush.msra.mxu0 0.0
        %654 = vmatpush.msra.mxu0 0.0
        %655 = vmatpush.msra.mxu0 %v587
        %656 = vmatmul.f32.gmra.mxu0 %v629
        %v657 = vpop.f32.mrf.mxu0
        %v658 = vadd.f32 0.0, %v657
        %659 = vmatmul.f32.gmra.mxu0 %v632
        %v660 = vpop.f32.mrf.mxu0
        %v661 = vadd.f32 0.0, %v660
        %662 = vmatmul.f32.gmra.mxu0 %v635
        %v663 = vpop.f32.mrf.mxu0
        %v664 = vadd.f32 0.0, %v663
        %665 = vmatmul.f32.gmra.mxu0 %v638
        %v666 = vpop.f32.mrf.mxu0
        %v667 = vadd.f32 0.0, %v666
        %668 = vdwg.mxu0
        %669 = vrot.lane.b32.xlu0 %v523, 120
        %v670 = vpop.permute.xlu0 %669
        %671 = vrot.lane.b32.xlu0 %v526, 120
        %v672 = vpop.permute.xlu0 %671
        %673 = vrot.lane.b32.xlu0 %v529, 120
        %v674 = vpop.permute.xlu0 %673
        %675 = vrot.lane.b32.xlu0 %v532, 120
        %v676 = vpop.permute.xlu0 %675
        %v677 = vsel %vm627, %v670, 0
        %v679 = vsel %vm627, %v672, 0
        %v681 = vsel %vm627, %v674, 0
        %v683 = vsel %vm627, %v676, 0
        %685 = vmatpush.msra.mxu0 0.0
        %686 = vmatpush.msra.mxu0 0.0
        %687 = vmatpush.msra.mxu0 0.0
        %688 = vmatpush.msra.mxu0 0.0
        %689 = vmatpush.msra.mxu0 0.0
        %690 = vmatpush.msra.mxu0 0.0
        %691 = vmatpush.msra.mxu0 0.0
        %692 = vmatpush.msra.mxu0 0.0
        %693 = vmatpush.msra.mxu0 0.0
        %694 = vmatpush.msra.mxu0 0.0
        %695 = vmatpush.msra.mxu0 0.0
        %696 = vmatpush.msra.mxu0 0.0
        %697 = vmatpush.msra.mxu0 0.0
        %698 = vmatpush.msra.mxu0 0.0
        %699 = vmatpush.msra.mxu0 0.0
        %700 = vmatpush.msra.mxu0 %v588
        %701 = vmatmul.f32.gmra.mxu0 %v677
        %v702 = vpop.f32.mrf.mxu0
        %v703 = vadd.f32 0.0, %v702
        %704 = vmatmul.f32.gmra.mxu0 %v679
        %v705 = vpop.f32.mrf.mxu0
        %v706 = vadd.f32 0.0, %v705
        %707 = vmatmul.f32.gmra.mxu0 %v681
        %v708 = vpop.f32.mrf.mxu0
        %v709 = vadd.f32 0.0, %v708
        %710 = vmatmul.f32.gmra.mxu0 %v683
        %v711 = vpop.f32.mrf.mxu0
        %v712 = vadd.f32 0.0, %v711
        %713 = vdwg.mxu0
        %714 = vrot.lane.b32.xlu0 %v523, 112
        %v715 = vpop.permute.xlu0 %714
        %716 = vrot.lane.b32.xlu0 %v526, 112
        %v717 = vpop.permute.xlu0 %716
        %718 = vrot.lane.b32.xlu0 %v529, 112
        %v719 = vpop.permute.xlu0 %718
        %720 = vrot.lane.b32.xlu0 %v532, 112
        %v721 = vpop.permute.xlu0 %720
        %v722 = vsel %vm627, %v715, 0
        %v724 = vsel %vm627, %v717, 0
        %v726 = vsel %vm627, %v719, 0
        %v728 = vsel %vm627, %v721, 0
        %730 = vmatpush.msra.mxu0 0.0
        %731 = vmatpush.msra.mxu0 0.0
        %732 = vmatpush.msra.mxu0 0.0
        %733 = vmatpush.msra.mxu0 0.0
        %734 = vmatpush.msra.mxu0 0.0
        %735 = vmatpush.msra.mxu0 0.0
        %736 = vmatpush.msra.mxu0 0.0
        %737 = vmatpush.msra.mxu0 0.0
        %738 = vmatpush.msra.mxu0 0.0
        %739 = vmatpush.msra.mxu0 0.0
        %740 = vmatpush.msra.mxu0 0.0
        %741 = vmatpush.msra.mxu0 0.0
        %742 = vmatpush.msra.mxu0 0.0
        %743 = vmatpush.msra.mxu0 0.0
        %744 = vmatpush.msra.mxu0 0.0
        %745 = vmatpush.msra.mxu0 %v589
        %746 = vmatmul.f32.gmra.mxu0 %v722
        %v747 = vpop.f32.mrf.mxu0
        %v748 = vadd.f32 0.0, %v747
        %749 = vmatmul.f32.gmra.mxu0 %v724
        %v750 = vpop.f32.mrf.mxu0
        %v751 = vadd.f32 0.0, %v750
        %752 = vmatmul.f32.gmra.mxu0 %v726
        %v753 = vpop.f32.mrf.mxu0
        %v754 = vadd.f32 0.0, %v753
        %755 = vmatmul.f32.gmra.mxu0 %v728
        %v756 = vpop.f32.mrf.mxu0
        %v757 = vadd.f32 0.0, %v756
        %758 = vdwg.mxu0
        %759 = vrot.lane.b32.xlu0 %v523, 104
        %v760 = vpop.permute.xlu0 %759
        %761 = vrot.lane.b32.xlu0 %v526, 104
        %v762 = vpop.permute.xlu0 %761
        %763 = vrot.lane.b32.xlu0 %v529, 104
        %v764 = vpop.permute.xlu0 %763
        %765 = vrot.lane.b32.xlu0 %v532, 104
        %v766 = vpop.permute.xlu0 %765
        %v767 = vsel %vm627, %v760, 0
        %v769 = vsel %vm627, %v762, 0
        %v771 = vsel %vm627, %v764, 0
        %v773 = vsel %vm627, %v766, 0
        %775 = vmatpush.msra.mxu0 0.0
        %776 = vmatpush.msra.mxu0 0.0
        %777 = vmatpush.msra.mxu0 0.0
        %778 = vmatpush.msra.mxu0 0.0
        %779 = vmatpush.msra.mxu0 0.0
        %780 = vmatpush.msra.mxu0 0.0
        %781 = vmatpush.msra.mxu0 0.0
        %782 = vmatpush.msra.mxu0 0.0
        %783 = vmatpush.msra.mxu0 0.0
        %784 = vmatpush.msra.mxu0 0.0
        %785 = vmatpush.msra.mxu0 0.0
        %786 = vmatpush.msra.mxu0 0.0
        %787 = vmatpush.msra.mxu0 0.0
        %788 = vmatpush.msra.mxu0 0.0
        %789 = vmatpush.msra.mxu0 0.0
        %790 = vmatpush.msra.mxu0 %v590
        %791 = vmatmul.f32.gmra.mxu0 %v767
        %v792 = vpop.f32.mrf.mxu0
        %v793 = vadd.f32 0.0, %v792
        %794 = vmatmul.f32.gmra.mxu0 %v769
        %v795 = vpop.f32.mrf.mxu0
        %v796 = vadd.f32 0.0, %v795
        %797 = vmatmul.f32.gmra.mxu0 %v771
        %v798 = vpop.f32.mrf.mxu0
        %v799 = vadd.f32 0.0, %v798
        %800 = vmatmul.f32.gmra.mxu0 %v773
        %v801 = vpop.f32.mrf.mxu0
        %v802 = vadd.f32 0.0, %v801
        %803 = vdwg.mxu0
        %804 = vrot.lane.b32.xlu0 %v523, 96
        %v805 = vpop.permute.xlu0 %804
        %806 = vrot.lane.b32.xlu0 %v526, 96
        %v807 = vpop.permute.xlu0 %806
        %808 = vrot.lane.b32.xlu0 %v529, 96
        %v809 = vpop.permute.xlu0 %808
        %810 = vrot.lane.b32.xlu0 %v532, 96
        %v811 = vpop.permute.xlu0 %810
        %v812 = vsel %vm627, %v805, 0
        %v814 = vsel %vm627, %v807, 0
        %v816 = vsel %vm627, %v809, 0
        %v818 = vsel %vm627, %v811, 0
        %820 = vmatpush.msra.mxu0 0.0
        %821 = vmatpush.msra.mxu0 0.0
        %822 = vmatpush.msra.mxu0 0.0
        %823 = vmatpush.msra.mxu0 0.0
        %824 = vmatpush.msra.mxu0 0.0
        %825 = vmatpush.msra.mxu0 0.0
        %826 = vmatpush.msra.mxu0 0.0
        %827 = vmatpush.msra.mxu0 0.0
        %828 = vmatpush.msra.mxu0 0.0
        %829 = vmatpush.msra.mxu0 0.0
        %830 = vmatpush.msra.mxu0 0.0
        %831 = vmatpush.msra.mxu0 0.0
        %832 = vmatpush.msra.mxu0 0.0
        %833 = vmatpush.msra.mxu0 0.0
        %834 = vmatpush.msra.mxu0 0.0
        %835 = vmatpush.msra.mxu0 %v591
        %836 = vmatmul.f32.gmra.mxu0 %v812
        %v837 = vpop.f32.mrf.mxu0
        %v838 = vadd.f32 0.0, %v837
        %839 = vmatmul.f32.gmra.mxu0 %v814
        %v840 = vpop.f32.mrf.mxu0
        %v841 = vadd.f32 0.0, %v840
        %842 = vmatmul.f32.gmra.mxu0 %v816
        %v843 = vpop.f32.mrf.mxu0
        %v844 = vadd.f32 0.0, %v843
        %845 = vmatmul.f32.gmra.mxu0 %v818
        %v846 = vpop.f32.mrf.mxu0
        %v847 = vadd.f32 0.0, %v846
        %848 = vdwg.mxu0
        %849 = vrot.lane.b32.xlu0 %v523, 88
        %v850 = vpop.permute.xlu0 %849
        %851 = vrot.lane.b32.xlu0 %v526, 88
        %v852 = vpop.permute.xlu0 %851
        %853 = vrot.lane.b32.xlu0 %v529, 88
        %v854 = vpop.permute.xlu0 %853
        %855 = vrot.lane.b32.xlu0 %v532, 88
        %v856 = vpop.permute.xlu0 %855
        %v857 = vsel %vm627, %v850, 0
        %v859 = vsel %vm627, %v852, 0
        %v861 = vsel %vm627, %v854, 0
        %v863 = vsel %vm627, %v856, 0
        %865 = vmatpush.msra.mxu0 0.0
        %866 = vmatpush.msra.mxu0 0.0
        %867 = vmatpush.msra.mxu0 0.0
        %868 = vmatpush.msra.mxu0 0.0
        %869 = vmatpush.msra.mxu0 0.0
        %870 = vmatpush.msra.mxu0 0.0
        %871 = vmatpush.msra.mxu0 0.0
        %872 = vmatpush.msra.mxu0 0.0
        %873 = vmatpush.msra.mxu0 0.0
        %874 = vmatpush.msra.mxu0 0.0
        %875 = vmatpush.msra.mxu0 0.0
        %876 = vmatpush.msra.mxu0 0.0
        %877 = vmatpush.msra.mxu0 0.0
        %878 = vmatpush.msra.mxu0 0.0
        %879 = vmatpush.msra.mxu0 0.0
        %880 = vmatpush.msra.mxu0 %v592
        %881 = vmatmul.f32.gmra.mxu0 %v857
        %v882 = vpop.f32.mrf.mxu0
        %v883 = vadd.f32 0.0, %v882
        %884 = vmatmul.f32.gmra.mxu0 %v859
        %v885 = vpop.f32.mrf.mxu0
        %v886 = vadd.f32 0.0, %v885
        %887 = vmatmul.f32.gmra.mxu0 %v861
        %v888 = vpop.f32.mrf.mxu0
        %v889 = vadd.f32 0.0, %v888
        %890 = vmatmul.f32.gmra.mxu0 %v863
        %v891 = vpop.f32.mrf.mxu0
        %v892 = vadd.f32 0.0, %v891
        %893 = vdwg.mxu0
        %894 = vrot.lane.b32.xlu0 %v523, 80
        %v895 = vpop.permute.xlu0 %894
        %896 = vrot.lane.b32.xlu0 %v526, 80
        %v897 = vpop.permute.xlu0 %896
        %898 = vrot.lane.b32.xlu0 %v529, 80
        %v899 = vpop.permute.xlu0 %898
        %900 = vrot.lane.b32.xlu0 %v532, 80
        %v901 = vpop.permute.xlu0 %900
        %v902 = vsel %vm627, %v895, 0
        %v904 = vsel %vm627, %v897, 0
        %v906 = vsel %vm627, %v899, 0
        %v908 = vsel %vm627, %v901, 0
        %910 = vmatpush.msra.mxu0 0.0
        %911 = vmatpush.msra.mxu0 0.0
        %912 = vmatpush.msra.mxu0 0.0
        %913 = vmatpush.msra.mxu0 0.0
        %914 = vmatpush.msra.mxu0 0.0
        %915 = vmatpush.msra.mxu0 0.0
        %916 = vmatpush.msra.mxu0 0.0
        %917 = vmatpush.msra.mxu0 0.0
        %918 = vmatpush.msra.mxu0 0.0
        %919 = vmatpush.msra.mxu0 0.0
        %920 = vmatpush.msra.mxu0 0.0
        %921 = vmatpush.msra.mxu0 0.0
        %922 = vmatpush.msra.mxu0 0.0
        %923 = vmatpush.msra.mxu0 0.0
        %924 = vmatpush.msra.mxu0 0.0
        %925 = vmatpush.msra.mxu0 %v593
        %926 = vmatmul.f32.gmra.mxu0 %v902
        %v927 = vpop.f32.mrf.mxu0
        %v928 = vadd.f32 0.0, %v927
        %929 = vmatmul.f32.gmra.mxu0 %v904
        %v930 = vpop.f32.mrf.mxu0
        %v931 = vadd.f32 0.0, %v930
        %932 = vmatmul.f32.gmra.mxu0 %v906
        %v933 = vpop.f32.mrf.mxu0
        %v934 = vadd.f32 0.0, %v933
        %935 = vmatmul.f32.gmra.mxu0 %v908
        %v936 = vpop.f32.mrf.mxu0
        %v937 = vadd.f32 0.0, %v936
        %938 = vdwg.mxu0
        %939 = vrot.lane.b32.xlu0 %v523, 72
        %v940 = vpop.permute.xlu0 %939
        %941 = vrot.lane.b32.xlu0 %v526, 72
        %v942 = vpop.permute.xlu0 %941
        %943 = vrot.lane.b32.xlu0 %v529, 72
        %v944 = vpop.permute.xlu0 %943
        %945 = vrot.lane.b32.xlu0 %v532, 72
        %v946 = vpop.permute.xlu0 %945
        %v947 = vsel %vm627, %v940, 0
        %v949 = vsel %vm627, %v942, 0
        %v951 = vsel %vm627, %v944, 0
        %v953 = vsel %vm627, %v946, 0
        %955 = vmatpush.msra.mxu0 0.0
        %956 = vmatpush.msra.mxu0 0.0
        %957 = vmatpush.msra.mxu0 0.0
        %958 = vmatpush.msra.mxu0 0.0
        %959 = vmatpush.msra.mxu0 0.0
        %960 = vmatpush.msra.mxu0 0.0
        %961 = vmatpush.msra.mxu0 0.0
        %962 = vmatpush.msra.mxu0 0.0
        %963 = vmatpush.msra.mxu0 0.0
        %964 = vmatpush.msra.mxu0 0.0
        %965 = vmatpush.msra.mxu0 0.0
        %966 = vmatpush.msra.mxu0 0.0
        %967 = vmatpush.msra.mxu0 0.0
        %968 = vmatpush.msra.mxu0 0.0
        %969 = vmatpush.msra.mxu0 0.0
        %970 = vmatpush.msra.mxu0 %v594
        %971 = vmatmul.f32.gmra.mxu0 %v947
        %v972 = vpop.f32.mrf.mxu0
        %v973 = vadd.f32 0.0, %v972
        %974 = vmatmul.f32.gmra.mxu0 %v949
        %v975 = vpop.f32.mrf.mxu0
        %v976 = vadd.f32 0.0, %v975
        %977 = vmatmul.f32.gmra.mxu0 %v951
        %v978 = vpop.f32.mrf.mxu0
        %v979 = vadd.f32 0.0, %v978
        %980 = vmatmul.f32.gmra.mxu0 %v953
        %v981 = vpop.f32.mrf.mxu0
        %v982 = vadd.f32 0.0, %v981
        %983 = vdwg.mxu0
        %v984 = vld [vmem:[%s1] sm:$0xff]
        %v985 = vld [vmem:[%s1 + $0x8] sm:$0xff]
        %v986 = vld [vmem:[%s1 + $0x10] sm:$0xff]
        %v987 = vld [vmem:[%s1 + $0x18] sm:$0xff]
        %v988 = vld [vmem:[%s1 + $0x20] sm:$0xff]
        %v989 = vld [vmem:[%s1 + $0x28] sm:$0xff]
        %v990 = vld [vmem:[%s1 + $0x30] sm:$0xff]
        %v991 = vld [vmem:[%s1 + $0x38] sm:$0xff]
        %v992 = vld [vmem:[%s1 + $0x40] sm:$0xff]
        %v993 = vld [vmem:[%s1 + $0x48] sm:$0xff]
        %v994 = vld [vmem:[%s1 + $0x50] sm:$0xff]
        %v995 = vld [vmem:[%s1 + $0x58] sm:$0xff]
        %v996 = vld [vmem:[%s1 + $0x60] sm:$0xff]
        %v997 = vld [vmem:[%s1 + $0x68] sm:$0xff]
        %v998 = vld [vmem:[%s1 + $0x70] sm:$0xff]
        %v999 = vld [vmem:[%s1 + $0x78] sm:$0xff]
        %v1000 = vld [vmem:[%s1 + $0x80] sm:$0xff]
        %v1001 = vld [vmem:[%s1 + $0x88] sm:$0xff]
        %v1002 = vld [vmem:[%s1 + $0x90] sm:$0xff]
        %v1003 = vld [vmem:[%s1 + $0x98] sm:$0xff]
        %v1004 = vld [vmem:[%s1 + $0xa0] sm:$0xff]
        %v1005 = vld [vmem:[%s1 + $0xa8] sm:$0xff]
        %v1006 = vld [vmem:[%s1 + $0xb0] sm:$0xff]
        %v1007 = vld [vmem:[%s1 + $0xb8] sm:$0xff]
        %v1008 = vld [vmem:[%s1 + $0xc0] sm:$0xff]
        %v1009 = vld [vmem:[%s1 + $0xc8] sm:$0xff]
        %v1010 = vld [vmem:[%s1 + $0xd0] sm:$0xff]
        %v1011 = vld [vmem:[%s1 + $0xd8] sm:$0xff]
        %v1012 = vld [vmem:[%s1 + $0xe0] sm:$0xff]
        %v1013 = vld [vmem:[%s1 + $0xe8] sm:$0xff]
        %v1014 = vld [vmem:[%s1 + $0xf0] sm:$0xff]
        %v1015 = vld [vmem:[%s1 + $0xf8] sm:$0xff]
        %v1016 = vadd.f32 %v658, %v984
        %v1017 = vadd.f32 %v661, %v985
        %v1018 = vadd.f32 %v664, %v986
        %v1019 = vadd.f32 %v667, %v987
        %v1020 = vadd.f32 %v703, %v988
        %v1021 = vadd.f32 %v706, %v989
        %v1022 = vadd.f32 %v709, %v990
        %v1023 = vadd.f32 %v712, %v991
        %v1024 = vadd.f32 %v748, %v992
        %v1025 = vadd.f32 %v751, %v993
        %v1026 = vadd.f32 %v754, %v994
        %v1027 = vadd.f32 %v757, %v995
        %v1028 = vadd.f32 %v793, %v996
        %v1029 = vadd.f32 %v796, %v997
        %v1030 = vadd.f32 %v799, %v998
        %v1031 = vadd.f32 %v802, %v999
        %v1032 = vadd.f32 %v838, %v1000
        %v1033 = vadd.f32 %v841, %v1001
        %v1034 = vadd.f32 %v844, %v1002
        %v1035 = vadd.f32 %v847, %v1003
        %v1036 = vadd.f32 %v883, %v1004
        %v1037 = vadd.f32 %v886, %v1005
        %v1038 = vadd.f32 %v889, %v1006
        %v1039 = vadd.f32 %v892, %v1007
        %v1040 = vadd.f32 %v928, %v1008
        %v1041 = vadd.f32 %v931, %v1009
        %v1042 = vadd.f32 %v934, %v1010
        %v1043 = vadd.f32 %v937, %v1011
        %v1044 = vadd.f32 %v973, %v1012
        %v1045 = vadd.f32 %v976, %v1013
        %v1046 = vadd.f32 %v979, %v1014
        %v1047 = vadd.f32 %v982, %v1015
        %vm1048 = vcmask 261120
        %v1049 = vsel %vm1048, %v1016, -inf
        %1050 = vmax.xlane.f32.xlu0 %v1049
        %v1051 = vpop.xlane.xlu0 %1050
        %v1052 = vsel %vm1048, %v1017, -inf
        %1053 = vmax.xlane.f32.xlu0 %v1052
        %v1054 = vpop.xlane.xlu0 %1053
        %v1055 = vsel %vm1048, %v1018, -inf
        %1056 = vmax.xlane.f32.xlu0 %v1055
        %v1057 = vpop.xlane.xlu0 %1056
        %v1058 = vsel %vm1048, %v1019, -inf
        %1059 = vmax.xlane.f32.xlu0 %v1058
        %v1060 = vpop.xlane.xlu0 %1059
        %v1061 = vsel %vm1048, %v1020, -inf
        %1062 = vmax.xlane.f32.xlu0 %v1061
        %v1063 = vpop.xlane.xlu0 %1062
        %v1064 = vsel %vm1048, %v1021, -inf
        %1065 = vmax.xlane.f32.xlu0 %v1064
        %v1066 = vpop.xlane.xlu0 %1065
        %v1067 = vsel %vm1048, %v1022, -inf
        %1068 = vmax.xlane.f32.xlu0 %v1067
        %v1069 = vpop.xlane.xlu0 %1068
        %v1070 = vsel %vm1048, %v1023, -inf
        %1071 = vmax.xlane.f32.xlu0 %v1070
        %v1072 = vpop.xlane.xlu0 %1071
        %v1073 = vsel %vm1048, %v1024, -inf
        %1074 = vmax.xlane.f32.xlu0 %v1073
        %v1075 = vpop.xlane.xlu0 %1074
        %v1076 = vsel %vm1048, %v1025, -inf
        %1077 = vmax.xlane.f32.xlu0 %v1076
        %v1078 = vpop.xlane.xlu0 %1077
        %v1079 = vsel %vm1048, %v1026, -inf
        %1080 = vmax.xlane.f32.xlu0 %v1079
        %v1081 = vpop.xlane.xlu0 %1080
        %v1082 = vsel %vm1048, %v1027, -inf
        %1083 = vmax.xlane.f32.xlu0 %v1082
        %v1084 = vpop.xlane.xlu0 %1083
        %v1085 = vsel %vm1048, %v1028, -inf
        %1086 = vmax.xlane.f32.xlu0 %v1085
        %v1087 = vpop.xlane.xlu0 %1086
        %v1088 = vsel %vm1048, %v1029, -inf
        %1089 = vmax.xlane.f32.xlu0 %v1088
        %v1090 = vpop.xlane.xlu0 %1089
        %v1091 = vsel %vm1048, %v1030, -inf
        %1092 = vmax.xlane.f32.xlu0 %v1091
        %v1093 = vpop.xlane.xlu0 %1092
        %v1094 = vsel %vm1048, %v1031, -inf
        %1095 = vmax.xlane.f32.xlu0 %v1094
        %v1096 = vpop.xlane.xlu0 %1095
        %v1097 = vsel %vm1048, %v1032, -inf
        %1098 = vmax.xlane.f32.xlu0 %v1097
        %v1099 = vpop.xlane.xlu0 %1098
        %v1100 = vsel %vm1048, %v1033, -inf
        %1101 = vmax.xlane.f32.xlu0 %v1100
        %v1102 = vpop.xlane.xlu0 %1101
        %v1103 = vsel %vm1048, %v1034, -inf
        %1104 = vmax.xlane.f32.xlu0 %v1103
        %v1105 = vpop.xlane.xlu0 %1104
        %v1106 = vsel %vm1048, %v1035, -inf
        %1107 = vmax.xlane.f32.xlu0 %v1106
        %v1108 = vpop.xlane.xlu0 %1107
        %v1109 = vsel %vm1048, %v1036, -inf
        %1110 = vmax.xlane.f32.xlu0 %v1109
        %v1111 = vpop.xlane.xlu0 %1110
        %v1112 = vsel %vm1048, %v1037, -inf
        %1113 = vmax.xlane.f32.xlu0 %v1112
        %v1114 = vpop.xlane.xlu0 %1113
        %v1115 = vsel %vm1048, %v1038, -inf
        %1116 = vmax.xlane.f32.xlu0 %v1115
        %v1117 = vpop.xlane.xlu0 %1116
        %v1118 = vsel %vm1048, %v1039, -inf
        %1119 = vmax.xlane.f32.xlu0 %v1118
        %v1120 = vpop.xlane.xlu0 %1119
        %v1121 = vsel %vm1048, %v1040, -inf
        %1122 = vmax.xlane.f32.xlu0 %v1121
        %v1123 = vpop.xlane.xlu0 %1122
        %v1124 = vsel %vm1048, %v1041, -inf
        %1125 = vmax.xlane.f32.xlu0 %v1124
        %v1126 = vpop.xlane.xlu0 %1125
        %v1127 = vsel %vm1048, %v1042, -inf
        %1128 = vmax.xlane.f32.xlu0 %v1127
        %v1129 = vpop.xlane.xlu0 %1128
        %v1130 = vsel %vm1048, %v1043, -inf
        %1131 = vmax.xlane.f32.xlu0 %v1130
        %v1132 = vpop.xlane.xlu0 %1131
        %v1133 = vsel %vm1048, %v1044, -inf
        %1134 = vmax.xlane.f32.xlu0 %v1133
        %v1135 = vpop.xlane.xlu0 %1134
        %v1136 = vsel %vm1048, %v1045, -inf
        %1137 = vmax.xlane.f32.xlu0 %v1136
        %v1138 = vpop.xlane.xlu0 %1137
        %v1139 = vsel %vm1048, %v1046, -inf
        %1140 = vmax.xlane.f32.xlu0 %v1139
        %v1141 = vpop.xlane.xlu0 %1140
        %v1142 = vsel %vm1048, %v1047, -inf
        %1143 = vmax.xlane.f32.xlu0 %v1142
        %v1144 = vpop.xlane.xlu0 %1143
        %v1145 = vsub.f32 %v1016, %v1051
        %v1146 = vsub.f32 %v1017, %v1054
        %v1147 = vsub.f32 %v1018, %v1057
        %v1148 = vsub.f32 %v1019, %v1060
        %v1149 = vsub.f32 %v1020, %v1063
        %v1150 = vsub.f32 %v1021, %v1066
        %v1151 = vsub.f32 %v1022, %v1069
        %v1152 = vsub.f32 %v1023, %v1072
        %v1153 = vsub.f32 %v1024, %v1075
        %v1154 = vsub.f32 %v1025, %v1078
        %v1155 = vsub.f32 %v1026, %v1081
        %v1156 = vsub.f32 %v1027, %v1084
        %v1157 = vsub.f32 %v1028, %v1087
        %v1158 = vsub.f32 %v1029, %v1090
        %v1159 = vsub.f32 %v1030, %v1093
        %v1160 = vsub.f32 %v1031, %v1096
        %v1161 = vsub.f32 %v1032, %v1099
        %v1162 = vsub.f32 %v1033, %v1102
        %v1163 = vsub.f32 %v1034, %v1105
        %v1164 = vsub.f32 %v1035, %v1108
        %v1165 = vsub.f32 %v1036, %v1111
        %v1166 = vsub.f32 %v1037, %v1114
        %v1167 = vsub.f32 %v1038, %v1117
        %v1168 = vsub.f32 %v1039, %v1120
        %v1169 = vsub.f32 %v1040, %v1123
        %v1170 = vsub.f32 %v1041, %v1126
        %v1171 = vsub.f32 %v1042, %v1129
        %v1172 = vsub.f32 %v1043, %v1132
        %v1173 = vsub.f32 %v1044, %v1135
        %v1174 = vsub.f32 %v1045, %v1138
        %v1175 = vsub.f32 %v1046, %v1141
        %v1176 = vsub.f32 %v1047, %v1144
        %v1177 = vmul.f32 %v1145, 1.442695
        %v1178 = vpow.pop %v1177
        %v1179 = vmul.f32 %v1146, 1.442695
        %v1180 = vpow.pop %v1179
        %v1181 = vmul.f32 %v1147, 1.442695
        %v1182 = vpow.pop %v1181
        %v1183 = vmul.f32 %v1148, 1.442695
        %v1184 = vpow.pop %v1183
        %v1185 = vmul.f32 %v1149, 1.442695
        %v1186 = vpow.pop %v1185
        %v1187 = vmul.f32 %v1150, 1.442695
        %v1188 = vpow.pop %v1187
        %v1189 = vmul.f32 %v1151, 1.442695
        %v1190 = vpow.pop %v1189
        %v1191 = vmul.f32 %v1152, 1.442695
        %v1192 = vpow.pop %v1191
        %v1193 = vmul.f32 %v1153, 1.442695
        %v1194 = vpow.pop %v1193
        %v1195 = vmul.f32 %v1154, 1.442695
        %v1196 = vpow.pop %v1195
        %v1197 = vmul.f32 %v1155, 1.442695
        %v1198 = vpow.pop %v1197
        %v1199 = vmul.f32 %v1156, 1.442695
        %v1200 = vpow.pop %v1199
        %v1201 = vmul.f32 %v1157, 1.442695
        %v1202 = vpow.pop %v1201
        %v1203 = vmul.f32 %v1158, 1.442695
        %v1204 = vpow.pop %v1203
        %v1205 = vmul.f32 %v1159, 1.442695
        %v1206 = vpow.pop %v1205
        %v1207 = vmul.f32 %v1160, 1.442695
        %v1208 = vpow.pop %v1207
        %v1209 = vmul.f32 %v1161, 1.442695
        %v1210 = vpow.pop %v1209
        %v1211 = vmul.f32 %v1162, 1.442695
        %v1212 = vpow.pop %v1211
        %v1213 = vmul.f32 %v1163, 1.442695
        %v1214 = vpow.pop %v1213
        %v1215 = vmul.f32 %v1164, 1.442695
        %v1216 = vpow.pop %v1215
        %v1217 = vmul.f32 %v1165, 1.442695
        %v1218 = vpow.pop %v1217
        %v1219 = vmul.f32 %v1166, 1.442695
        %v1220 = vpow.pop %v1219
        %v1221 = vmul.f32 %v1167, 1.442695
        %v1222 = vpow.pop %v1221
        %v1223 = vmul.f32 %v1168, 1.442695
        %v1224 = vpow.pop %v1223
        %v1225 = vmul.f32 %v1169, 1.442695
        %v1226 = vpow.pop %v1225
        %v1227 = vmul.f32 %v1170, 1.442695
        %v1228 = vpow.pop %v1227
        %v1229 = vmul.f32 %v1171, 1.442695
        %v1230 = vpow.pop %v1229
        %v1231 = vmul.f32 %v1172, 1.442695
        %v1232 = vpow.pop %v1231
        %v1233 = vmul.f32 %v1173, 1.442695
        %v1234 = vpow.pop %v1233
        %v1235 = vmul.f32 %v1174, 1.442695
        %v1236 = vpow.pop %v1235
        %v1237 = vmul.f32 %v1175, 1.442695
        %v1238 = vpow.pop %v1237
        %v1239 = vmul.f32 %v1176, 1.442695
        %v1240 = vpow.pop %v1239
        %v1241 = vsel %vm1048, %v1178, 0.0
        %1242 = vadd.xlane.f32.xlu0 %v1241
        %v1243 = vpop.xlane.xlu0 %1242
        %v1244 = vsel %vm1048, %v1180, 0.0
        %1245 = vadd.xlane.f32.xlu0 %v1244
        %v1246 = vpop.xlane.xlu0 %1245
        %v1247 = vsel %vm1048, %v1182, 0.0
        %1248 = vadd.xlane.f32.xlu0 %v1247
        %v1249 = vpop.xlane.xlu0 %1248
        %v1250 = vsel %vm1048, %v1184, 0.0
        %1251 = vadd.xlane.f32.xlu0 %v1250
        %v1252 = vpop.xlane.xlu0 %1251
        %v1253 = vsel %vm1048, %v1186, 0.0
        %1254 = vadd.xlane.f32.xlu0 %v1253
        %v1255 = vpop.xlane.xlu0 %1254
        %v1256 = vsel %vm1048, %v1188, 0.0
        %1257 = vadd.xlane.f32.xlu0 %v1256
        %v1258 = vpop.xlane.xlu0 %1257
        %v1259 = vsel %vm1048, %v1190, 0.0
        %1260 = vadd.xlane.f32.xlu0 %v1259
        %v1261 = vpop.xlane.xlu0 %1260
        %v1262 = vsel %vm1048, %v1192, 0.0
        %1263 = vadd.xlane.f32.xlu0 %v1262
        %v1264 = vpop.xlane.xlu0 %1263
        %v1265 = vsel %vm1048, %v1194, 0.0
        %1266 = vadd.xlane.f32.xlu0 %v1265
        %v1267 = vpop.xlane.xlu0 %1266
        %v1268 = vsel %vm1048, %v1196, 0.0
        %1269 = vadd.xlane.f32.xlu0 %v1268
        %v1270 = vpop.xlane.xlu0 %1269
        %v1271 = vsel %vm1048, %v1198, 0.0
        %1272 = vadd.xlane.f32.xlu0 %v1271
        %v1273 = vpop.xlane.xlu0 %1272
        %v1274 = vsel %vm1048, %v1200, 0.0
        %1275 = vadd.xlane.f32.xlu0 %v1274
        %v1276 = vpop.xlane.xlu0 %1275
        %v1277 = vsel %vm1048, %v1202, 0.0
        %1278 = vadd.xlane.f32.xlu0 %v1277
        %v1279 = vpop.xlane.xlu0 %1278
        %v1280 = vsel %vm1048, %v1204, 0.0
        %1281 = vadd.xlane.f32.xlu0 %v1280
        %v1282 = vpop.xlane.xlu0 %1281
        %v1283 = vsel %vm1048, %v1206, 0.0
        %1284 = vadd.xlane.f32.xlu0 %v1283
        %v1285 = vpop.xlane.xlu0 %1284
        %v1286 = vsel %vm1048, %v1208, 0.0
        %1287 = vadd.xlane.f32.xlu0 %v1286
        %v1288 = vpop.xlane.xlu0 %1287
        %v1289 = vsel %vm1048, %v1210, 0.0
        %1290 = vadd.xlane.f32.xlu0 %v1289
        %v1291 = vpop.xlane.xlu0 %1290
        %v1292 = vsel %vm1048, %v1212, 0.0
        %1293 = vadd.xlane.f32.xlu0 %v1292
        %v1294 = vpop.xlane.xlu0 %1293
        %v1295 = vsel %vm1048, %v1214, 0.0
        %1296 = vadd.xlane.f32.xlu0 %v1295
        %v1297 = vpop.xlane.xlu0 %1296
        %v1298 = vsel %vm1048, %v1216, 0.0
        %1299 = vadd.xlane.f32.xlu0 %v1298
        %v1300 = vpop.xlane.xlu0 %1299
        %v1301 = vsel %vm1048, %v1218, 0.0
        %1302 = vadd.xlane.f32.xlu0 %v1301
        %v1303 = vpop.xlane.xlu0 %1302
        %v1304 = vsel %vm1048, %v1220, 0.0
        %1305 = vadd.xlane.f32.xlu0 %v1304
        %v1306 = vpop.xlane.xlu0 %1305
        %v1307 = vsel %vm1048, %v1222, 0.0
        %1308 = vadd.xlane.f32.xlu0 %v1307
        %v1309 = vpop.xlane.xlu0 %1308
        %v1310 = vsel %vm1048, %v1224, 0.0
        %1311 = vadd.xlane.f32.xlu0 %v1310
        %v1312 = vpop.xlane.xlu0 %1311
        %v1313 = vsel %vm1048, %v1226, 0.0
        %1314 = vadd.xlane.f32.xlu0 %v1313
        %v1315 = vpop.xlane.xlu0 %1314
        %v1316 = vsel %vm1048, %v1228, 0.0
        %1317 = vadd.xlane.f32.xlu0 %v1316
        %v1318 = vpop.xlane.xlu0 %1317
        %v1319 = vsel %vm1048, %v1230, 0.0
        %1320 = vadd.xlane.f32.xlu0 %v1319
        %v1321 = vpop.xlane.xlu0 %1320
        %v1322 = vsel %vm1048, %v1232, 0.0
        %1323 = vadd.xlane.f32.xlu0 %v1322
        %v1324 = vpop.xlane.xlu0 %1323
        %v1325 = vsel %vm1048, %v1234, 0.0
        %1326 = vadd.xlane.f32.xlu0 %v1325
        %v1327 = vpop.xlane.xlu0 %1326
        %v1328 = vsel %vm1048, %v1236, 0.0
        %1329 = vadd.xlane.f32.xlu0 %v1328
        %v1330 = vpop.xlane.xlu0 %1329
        %v1331 = vsel %vm1048, %v1238, 0.0
        %1332 = vadd.xlane.f32.xlu0 %v1331
        %v1333 = vpop.xlane.xlu0 %1332
        %v1334 = vsel %vm1048, %v1240, 0.0
        %1335 = vadd.xlane.f32.xlu0 %v1334
        %v1336 = vpop.xlane.xlu0 %1335
        %v1337 = vrcp.pop %v1243
        %v1338 = vmul.f32 %v1243, %v1337
        %v1339 = vsub.f32 1.0, %v1338
        %v1340 = vmul.f32 %v1337, %v1339
        %v1341 = vadd.f32 %v1337, %v1340
        %vm1342 = vweird.f32 %v1243
        %vm1343 = vweird.f32 %v1337
        %vm1344 = vmor %vm1342, %vm1343
        %v1345 = vsel %vm1344, %v1337, %v1341
        %v1346 = vand.u32 2147483647, %v1243
        %vm1347 = vcmp.eq.f32.partialorder %v1346, 8.507059e+37
        %v1348 = vand.u32 %v1243, 2147483648
        %v1349 = vor.u32 1.1754944e-38, %v1348
        %v1350 = vsel %vm1347, %v1349, %v1345
        %v1351 = vrcp.pop %v1246
        %v1352 = vmul.f32 %v1246, %v1351
        %v1353 = vsub.f32 1.0, %v1352
        %v1354 = vmul.f32 %v1351, %v1353
        %v1355 = vadd.f32 %v1351, %v1354
        %vm1356 = vweird.f32 %v1246
        %vm1357 = vweird.f32 %v1351
        %vm1358 = vmor %vm1356, %vm1357
        %v1359 = vsel %vm1358, %v1351, %v1355
        %v1360 = vand.u32 2147483647, %v1246
        %vm1361 = vcmp.eq.f32.partialorder %v1360, 8.507059e+37
        %v1362 = vand.u32 %v1246, 2147483648
        %v1363 = vor.u32 1.1754944e-38, %v1362
        %v1364 = vsel %vm1361, %v1363, %v1359
        %v1365 = vrcp.pop %v1249
        %v1366 = vmul.f32 %v1249, %v1365
        %v1367 = vsub.f32 1.0, %v1366
        %v1368 = vmul.f32 %v1365, %v1367
        %v1369 = vadd.f32 %v1365, %v1368
        %vm1370 = vweird.f32 %v1249
        %vm1371 = vweird.f32 %v1365
        %vm1372 = vmor %vm1370, %vm1371
        %v1373 = vsel %vm1372, %v1365, %v1369
        %v1374 = vand.u32 2147483647, %v1249
        %vm1375 = vcmp.eq.f32.partialorder %v1374, 8.507059e+37
        %v1376 = vand.u32 %v1249, 2147483648
        %v1377 = vor.u32 1.1754944e-38, %v1376
        %v1378 = vsel %vm1375, %v1377, %v1373
        %v1379 = vrcp.pop %v1252
        %v1380 = vmul.f32 %v1252, %v1379
        %v1381 = vsub.f32 1.0, %v1380
        %v1382 = vmul.f32 %v1379, %v1381
        %v1383 = vadd.f32 %v1379, %v1382
        %vm1384 = vweird.f32 %v1252
        %vm1385 = vweird.f32 %v1379
        %vm1386 = vmor %vm1384, %vm1385
        %v1387 = vsel %vm1386, %v1379, %v1383
        %v1388 = vand.u32 2147483647, %v1252
        %vm1389 = vcmp.eq.f32.partialorder %v1388, 8.507059e+37
        %v1390 = vand.u32 %v1252, 2147483648
        %v1391 = vor.u32 1.1754944e-38, %v1390
        %v1392 = vsel %vm1389, %v1391, %v1387
        %v1393 = vrcp.pop %v1255
        %v1394 = vmul.f32 %v1255, %v1393
        %v1395 = vsub.f32 1.0, %v1394
        %v1396 = vmul.f32 %v1393, %v1395
        %v1397 = vadd.f32 %v1393, %v1396
        %vm1398 = vweird.f32 %v1255
        %vm1399 = vweird.f32 %v1393
        %vm1400 = vmor %vm1398, %vm1399
        %v1401 = vsel %vm1400, %v1393, %v1397
        %v1402 = vand.u32 2147483647, %v1255
        %vm1403 = vcmp.eq.f32.partialorder %v1402, 8.507059e+37
        %v1404 = vand.u32 %v1255, 2147483648
        %v1405 = vor.u32 1.1754944e-38, %v1404
        %v1406 = vsel %vm1403, %v1405, %v1401
        %v1407 = vrcp.pop %v1258
        %v1408 = vmul.f32 %v1258, %v1407
        %v1409 = vsub.f32 1.0, %v1408
        %v1410 = vmul.f32 %v1407, %v1409
        %v1411 = vadd.f32 %v1407, %v1410
        %vm1412 = vweird.f32 %v1258
        %vm1413 = vweird.f32 %v1407
        %vm1414 = vmor %vm1412, %vm1413
        %v1415 = vsel %vm1414, %v1407, %v1411
        %v1416 = vand.u32 2147483647, %v1258
        %vm1417 = vcmp.eq.f32.partialorder %v1416, 8.507059e+37
        %v1418 = vand.u32 %v1258, 2147483648
        %v1419 = vor.u32 1.1754944e-38, %v1418
        %v1420 = vsel %vm1417, %v1419, %v1415
        %v1421 = vrcp.pop %v1261
        %v1422 = vmul.f32 %v1261, %v1421
        %v1423 = vsub.f32 1.0, %v1422
        %v1424 = vmul.f32 %v1421, %v1423
        %v1425 = vadd.f32 %v1421, %v1424
        %vm1426 = vweird.f32 %v1261
        %vm1427 = vweird.f32 %v1421
        %vm1428 = vmor %vm1426, %vm1427
        %v1429 = vsel %vm1428, %v1421, %v1425
        %v1430 = vand.u32 2147483647, %v1261
        %vm1431 = vcmp.eq.f32.partialorder %v1430, 8.507059e+37
        %v1432 = vand.u32 %v1261, 2147483648
        %v1433 = vor.u32 1.1754944e-38, %v1432
        %v1434 = vsel %vm1431, %v1433, %v1429
        %v1435 = vrcp.pop %v1264
        %v1436 = vmul.f32 %v1264, %v1435
        %v1437 = vsub.f32 1.0, %v1436
        %v1438 = vmul.f32 %v1435, %v1437
        %v1439 = vadd.f32 %v1435, %v1438
        %vm1440 = vweird.f32 %v1264
        %vm1441 = vweird.f32 %v1435
        %vm1442 = vmor %vm1440, %vm1441
        %v1443 = vsel %vm1442, %v1435, %v1439
        %v1444 = vand.u32 2147483647, %v1264
        %vm1445 = vcmp.eq.f32.partialorder %v1444, 8.507059e+37
        %v1446 = vand.u32 %v1264, 2147483648
        %v1447 = vor.u32 1.1754944e-38, %v1446
        %v1448 = vsel %vm1445, %v1447, %v1443
        %v1449 = vrcp.pop %v1267
        %v1450 = vmul.f32 %v1267, %v1449
        %v1451 = vsub.f32 1.0, %v1450
        %v1452 = vmul.f32 %v1449, %v1451
        %v1453 = vadd.f32 %v1449, %v1452
        %vm1454 = vweird.f32 %v1267
        %vm1455 = vweird.f32 %v1449
        %vm1456 = vmor %vm1454, %vm1455
        %v1457 = vsel %vm1456, %v1449, %v1453
        %v1458 = vand.u32 2147483647, %v1267
        %vm1459 = vcmp.eq.f32.partialorder %v1458, 8.507059e+37
        %v1460 = vand.u32 %v1267, 2147483648
        %v1461 = vor.u32 1.1754944e-38, %v1460
        %v1462 = vsel %vm1459, %v1461, %v1457
        %v1463 = vrcp.pop %v1270
        %v1464 = vmul.f32 %v1270, %v1463
        %v1465 = vsub.f32 1.0, %v1464
        %v1466 = vmul.f32 %v1463, %v1465
        %v1467 = vadd.f32 %v1463, %v1466
        %vm1468 = vweird.f32 %v1270
        %vm1469 = vweird.f32 %v1463
        %vm1470 = vmor %vm1468, %vm1469
        %v1471 = vsel %vm1470, %v1463, %v1467
        %v1472 = vand.u32 2147483647, %v1270
        %vm1473 = vcmp.eq.f32.partialorder %v1472, 8.507059e+37
        %v1474 = vand.u32 %v1270, 2147483648
        %v1475 = vor.u32 1.1754944e-38, %v1474
        %v1476 = vsel %vm1473, %v1475, %v1471
        %v1477 = vrcp.pop %v1273
        %v1478 = vmul.f32 %v1273, %v1477
        %v1479 = vsub.f32 1.0, %v1478
        %v1480 = vmul.f32 %v1477, %v1479
        %v1481 = vadd.f32 %v1477, %v1480
        %vm1482 = vweird.f32 %v1273
        %vm1483 = vweird.f32 %v1477
        %vm1484 = vmor %vm1482, %vm1483
        %v1485 = vsel %vm1484, %v1477, %v1481
        %v1486 = vand.u32 2147483647, %v1273
        %vm1487 = vcmp.eq.f32.partialorder %v1486, 8.507059e+37
        %v1488 = vand.u32 %v1273, 2147483648
        %v1489 = vor.u32 1.1754944e-38, %v1488
        %v1490 = vsel %vm1487, %v1489, %v1485
        %v1491 = vrcp.pop %v1276
        %v1492 = vmul.f32 %v1276, %v1491
        %v1493 = vsub.f32 1.0, %v1492
        %v1494 = vmul.f32 %v1491, %v1493
        %v1495 = vadd.f32 %v1491, %v1494
        %vm1496 = vweird.f32 %v1276
        %vm1497 = vweird.f32 %v1491
        %vm1498 = vmor %vm1496, %vm1497
        %v1499 = vsel %vm1498, %v1491, %v1495
        %v1500 = vand.u32 2147483647, %v1276
        %vm1501 = vcmp.eq.f32.partialorder %v1500, 8.507059e+37
        %v1502 = vand.u32 %v1276, 2147483648
        %v1503 = vor.u32 1.1754944e-38, %v1502
        %v1504 = vsel %vm1501, %v1503, %v1499
        %v1505 = vrcp.pop %v1279
        %v1506 = vmul.f32 %v1279, %v1505
        %v1507 = vsub.f32 1.0, %v1506
        %v1508 = vmul.f32 %v1505, %v1507
        %v1509 = vadd.f32 %v1505, %v1508
        %vm1510 = vweird.f32 %v1279
        %vm1511 = vweird.f32 %v1505
        %vm1512 = vmor %vm1510, %vm1511
        %v1513 = vsel %vm1512, %v1505, %v1509
        %v1514 = vand.u32 2147483647, %v1279
        %vm1515 = vcmp.eq.f32.partialorder %v1514, 8.507059e+37
        %v1516 = vand.u32 %v1279, 2147483648
        %v1517 = vor.u32 1.1754944e-38, %v1516
        %v1518 = vsel %vm1515, %v1517, %v1513
        %v1519 = vrcp.pop %v1282
        %v1520 = vmul.f32 %v1282, %v1519
        %v1521 = vsub.f32 1.0, %v1520
        %v1522 = vmul.f32 %v1519, %v1521
        %v1523 = vadd.f32 %v1519, %v1522
        %vm1524 = vweird.f32 %v1282
        %vm1525 = vweird.f32 %v1519
        %vm1526 = vmor %vm1524, %vm1525
        %v1527 = vsel %vm1526, %v1519, %v1523
        %v1528 = vand.u32 2147483647, %v1282
        %vm1529 = vcmp.eq.f32.partialorder %v1528, 8.507059e+37
        %v1530 = vand.u32 %v1282, 2147483648
        %v1531 = vor.u32 1.1754944e-38, %v1530
        %v1532 = vsel %vm1529, %v1531, %v1527
        %v1533 = vrcp.pop %v1285
        %v1534 = vmul.f32 %v1285, %v1533
        %v1535 = vsub.f32 1.0, %v1534
        %v1536 = vmul.f32 %v1533, %v1535
        %v1537 = vadd.f32 %v1533, %v1536
        %vm1538 = vweird.f32 %v1285
        %vm1539 = vweird.f32 %v1533
        %vm1540 = vmor %vm1538, %vm1539
        %v1541 = vsel %vm1540, %v1533, %v1537
        %v1542 = vand.u32 2147483647, %v1285
        %vm1543 = vcmp.eq.f32.partialorder %v1542, 8.507059e+37
        %v1544 = vand.u32 %v1285, 2147483648
        %v1545 = vor.u32 1.1754944e-38, %v1544
        %v1546 = vsel %vm1543, %v1545, %v1541
        %v1547 = vrcp.pop %v1288
        %v1548 = vmul.f32 %v1288, %v1547
        %v1549 = vsub.f32 1.0, %v1548
        %v1550 = vmul.f32 %v1547, %v1549
        %v1551 = vadd.f32 %v1547, %v1550
        %vm1552 = vweird.f32 %v1288
        %vm1553 = vweird.f32 %v1547
        %vm1554 = vmor %vm1552, %vm1553
        %v1555 = vsel %vm1554, %v1547, %v1551
        %v1556 = vand.u32 2147483647, %v1288
        %vm1557 = vcmp.eq.f32.partialorder %v1556, 8.507059e+37
        %v1558 = vand.u32 %v1288, 2147483648
        %v1559 = vor.u32 1.1754944e-38, %v1558
        %v1560 = vsel %vm1557, %v1559, %v1555
        %v1561 = vrcp.pop %v1291
        %v1562 = vmul.f32 %v1291, %v1561
        %v1563 = vsub.f32 1.0, %v1562
        %v1564 = vmul.f32 %v1561, %v1563
        %v1565 = vadd.f32 %v1561, %v1564
        %vm1566 = vweird.f32 %v1291
        %vm1567 = vweird.f32 %v1561
        %vm1568 = vmor %vm1566, %vm1567
        %v1569 = vsel %vm1568, %v1561, %v1565
        %v1570 = vand.u32 2147483647, %v1291
        %vm1571 = vcmp.eq.f32.partialorder %v1570, 8.507059e+37
        %v1572 = vand.u32 %v1291, 2147483648
        %v1573 = vor.u32 1.1754944e-38, %v1572
        %v1574 = vsel %vm1571, %v1573, %v1569
        %v1575 = vrcp.pop %v1294
        %v1576 = vmul.f32 %v1294, %v1575
        %v1577 = vsub.f32 1.0, %v1576
        %v1578 = vmul.f32 %v1575, %v1577
        %v1579 = vadd.f32 %v1575, %v1578
        %vm1580 = vweird.f32 %v1294
        %vm1581 = vweird.f32 %v1575
        %vm1582 = vmor %vm1580, %vm1581
        %v1583 = vsel %vm1582, %v1575, %v1579
        %v1584 = vand.u32 2147483647, %v1294
        %vm1585 = vcmp.eq.f32.partialorder %v1584, 8.507059e+37
        %v1586 = vand.u32 %v1294, 2147483648
        %v1587 = vor.u32 1.1754944e-38, %v1586
        %v1588 = vsel %vm1585, %v1587, %v1583
        %v1589 = vrcp.pop %v1297
        %v1590 = vmul.f32 %v1297, %v1589
        %v1591 = vsub.f32 1.0, %v1590
        %v1592 = vmul.f32 %v1589, %v1591
        %v1593 = vadd.f32 %v1589, %v1592
        %vm1594 = vweird.f32 %v1297
        %vm1595 = vweird.f32 %v1589
        %vm1596 = vmor %vm1594, %vm1595
        %v1597 = vsel %vm1596, %v1589, %v1593
        %v1598 = vand.u32 2147483647, %v1297
        %vm1599 = vcmp.eq.f32.partialorder %v1598, 8.507059e+37
        %v1600 = vand.u32 %v1297, 2147483648
        %v1601 = vor.u32 1.1754944e-38, %v1600
        %v1602 = vsel %vm1599, %v1601, %v1597
        %v1603 = vrcp.pop %v1300
        %v1604 = vmul.f32 %v1300, %v1603
        %v1605 = vsub.f32 1.0, %v1604
        %v1606 = vmul.f32 %v1603, %v1605
        %v1607 = vadd.f32 %v1603, %v1606
        %vm1608 = vweird.f32 %v1300
        %vm1609 = vweird.f32 %v1603
        %vm1610 = vmor %vm1608, %vm1609
        %v1611 = vsel %vm1610, %v1603, %v1607
        %v1612 = vand.u32 2147483647, %v1300
        %vm1613 = vcmp.eq.f32.partialorder %v1612, 8.507059e+37
        %v1614 = vand.u32 %v1300, 2147483648
        %v1615 = vor.u32 1.1754944e-38, %v1614
        %v1616 = vsel %vm1613, %v1615, %v1611
        %v1617 = vrcp.pop %v1303
        %v1618 = vmul.f32 %v1303, %v1617
        %v1619 = vsub.f32 1.0, %v1618
        %v1620 = vmul.f32 %v1617, %v1619
        %v1621 = vadd.f32 %v1617, %v1620
        %vm1622 = vweird.f32 %v1303
        %vm1623 = vweird.f32 %v1617
        %vm1624 = vmor %vm1622, %vm1623
        %v1625 = vsel %vm1624, %v1617, %v1621
        %v1626 = vand.u32 2147483647, %v1303
        %vm1627 = vcmp.eq.f32.partialorder %v1626, 8.507059e+37
        %v1628 = vand.u32 %v1303, 2147483648
        %v1629 = vor.u32 1.1754944e-38, %v1628
        %v1630 = vsel %vm1627, %v1629, %v1625
        %v1631 = vrcp.pop %v1306
        %v1632 = vmul.f32 %v1306, %v1631
        %v1633 = vsub.f32 1.0, %v1632
        %v1634 = vmul.f32 %v1631, %v1633
        %v1635 = vadd.f32 %v1631, %v1634
        %vm1636 = vweird.f32 %v1306
        %vm1637 = vweird.f32 %v1631
        %vm1638 = vmor %vm1636, %vm1637
        %v1639 = vsel %vm1638, %v1631, %v1635
        %v1640 = vand.u32 2147483647, %v1306
        %vm1641 = vcmp.eq.f32.partialorder %v1640, 8.507059e+37
        %v1642 = vand.u32 %v1306, 2147483648
        %v1643 = vor.u32 1.1754944e-38, %v1642
        %v1644 = vsel %vm1641, %v1643, %v1639
        %v1645 = vrcp.pop %v1309
        %v1646 = vmul.f32 %v1309, %v1645
        %v1647 = vsub.f32 1.0, %v1646
        %v1648 = vmul.f32 %v1645, %v1647
        %v1649 = vadd.f32 %v1645, %v1648
        %vm1650 = vweird.f32 %v1309
        %vm1651 = vweird.f32 %v1645
        %vm1652 = vmor %vm1650, %vm1651
        %v1653 = vsel %vm1652, %v1645, %v1649
        %v1654 = vand.u32 2147483647, %v1309
        %vm1655 = vcmp.eq.f32.partialorder %v1654, 8.507059e+37
        %v1656 = vand.u32 %v1309, 2147483648
        %v1657 = vor.u32 1.1754944e-38, %v1656
        %v1658 = vsel %vm1655, %v1657, %v1653
        %v1659 = vrcp.pop %v1312
        %v1660 = vmul.f32 %v1312, %v1659
        %v1661 = vsub.f32 1.0, %v1660
        %v1662 = vmul.f32 %v1659, %v1661
        %v1663 = vadd.f32 %v1659, %v1662
        %vm1664 = vweird.f32 %v1312
        %vm1665 = vweird.f32 %v1659
        %vm1666 = vmor %vm1664, %vm1665
        %v1667 = vsel %vm1666, %v1659, %v1663
        %v1668 = vand.u32 2147483647, %v1312
        %vm1669 = vcmp.eq.f32.partialorder %v1668, 8.507059e+37
        %v1670 = vand.u32 %v1312, 2147483648
        %v1671 = vor.u32 1.1754944e-38, %v1670
        %v1672 = vsel %vm1669, %v1671, %v1667
        %v1673 = vrcp.pop %v1315
        %v1674 = vmul.f32 %v1315, %v1673
        %v1675 = vsub.f32 1.0, %v1674
        %v1676 = vmul.f32 %v1673, %v1675
        %v1677 = vadd.f32 %v1673, %v1676
        %vm1678 = vweird.f32 %v1315
        %vm1679 = vweird.f32 %v1673
        %vm1680 = vmor %vm1678, %vm1679
        %v1681 = vsel %vm1680, %v1673, %v1677
        %v1682 = vand.u32 2147483647, %v1315
        %vm1683 = vcmp.eq.f32.partialorder %v1682, 8.507059e+37
        %v1684 = vand.u32 %v1315, 2147483648
        %v1685 = vor.u32 1.1754944e-38, %v1684
        %v1686 = vsel %vm1683, %v1685, %v1681
        %v1687 = vrcp.pop %v1318
        %v1688 = vmul.f32 %v1318, %v1687
        %v1689 = vsub.f32 1.0, %v1688
        %v1690 = vmul.f32 %v1687, %v1689
        %v1691 = vadd.f32 %v1687, %v1690
        %vm1692 = vweird.f32 %v1318
        %vm1693 = vweird.f32 %v1687
        %vm1694 = vmor %vm1692, %vm1693
        %v1695 = vsel %vm1694, %v1687, %v1691
        %v1696 = vand.u32 2147483647, %v1318
        %vm1697 = vcmp.eq.f32.partialorder %v1696, 8.507059e+37
        %v1698 = vand.u32 %v1318, 2147483648
        %v1699 = vor.u32 1.1754944e-38, %v1698
        %v1700 = vsel %vm1697, %v1699, %v1695
        %v1701 = vrcp.pop %v1321
        %v1702 = vmul.f32 %v1321, %v1701
        %v1703 = vsub.f32 1.0, %v1702
        %v1704 = vmul.f32 %v1701, %v1703
        %v1705 = vadd.f32 %v1701, %v1704
        %vm1706 = vweird.f32 %v1321
        %vm1707 = vweird.f32 %v1701
        %vm1708 = vmor %vm1706, %vm1707
        %v1709 = vsel %vm1708, %v1701, %v1705
        %v1710 = vand.u32 2147483647, %v1321
        %vm1711 = vcmp.eq.f32.partialorder %v1710, 8.507059e+37
        %v1712 = vand.u32 %v1321, 2147483648
        %v1713 = vor.u32 1.1754944e-38, %v1712
        %v1714 = vsel %vm1711, %v1713, %v1709
        %v1715 = vrcp.pop %v1324
        %v1716 = vmul.f32 %v1324, %v1715
        %v1717 = vsub.f32 1.0, %v1716
        %v1718 = vmul.f32 %v1715, %v1717
        %v1719 = vadd.f32 %v1715, %v1718
        %vm1720 = vweird.f32 %v1324
        %vm1721 = vweird.f32 %v1715
        %vm1722 = vmor %vm1720, %vm1721
        %v1723 = vsel %vm1722, %v1715, %v1719
        %v1724 = vand.u32 2147483647, %v1324
        %vm1725 = vcmp.eq.f32.partialorder %v1724, 8.507059e+37
        %v1726 = vand.u32 %v1324, 2147483648
        %v1727 = vor.u32 1.1754944e-38, %v1726
        %v1728 = vsel %vm1725, %v1727, %v1723
        %v1729 = vrcp.pop %v1327
        %v1730 = vmul.f32 %v1327, %v1729
        %v1731 = vsub.f32 1.0, %v1730
        %v1732 = vmul.f32 %v1729, %v1731
        %v1733 = vadd.f32 %v1729, %v1732
        %vm1734 = vweird.f32 %v1327
        %vm1735 = vweird.f32 %v1729
        %vm1736 = vmor %vm1734, %vm1735
        %v1737 = vsel %vm1736, %v1729, %v1733
        %v1738 = vand.u32 2147483647, %v1327
        %vm1739 = vcmp.eq.f32.partialorder %v1738, 8.507059e+37
        %v1740 = vand.u32 %v1327, 2147483648
        %v1741 = vor.u32 1.1754944e-38, %v1740
        %v1742 = vsel %vm1739, %v1741, %v1737
        %v1743 = vrcp.pop %v1330
        %v1744 = vmul.f32 %v1330, %v1743
        %v1745 = vsub.f32 1.0, %v1744
        %v1746 = vmul.f32 %v1743, %v1745
        %v1747 = vadd.f32 %v1743, %v1746
        %vm1748 = vweird.f32 %v1330
        %vm1749 = vweird.f32 %v1743
        %vm1750 = vmor %vm1748, %vm1749
        %v1751 = vsel %vm1750, %v1743, %v1747
        %v1752 = vand.u32 2147483647, %v1330
        %vm1753 = vcmp.eq.f32.partialorder %v1752, 8.507059e+37
        %v1754 = vand.u32 %v1330, 2147483648
        %v1755 = vor.u32 1.1754944e-38, %v1754
        %v1756 = vsel %vm1753, %v1755, %v1751
        %v1757 = vrcp.pop %v1333
        %v1758 = vmul.f32 %v1333, %v1757
        %v1759 = vsub.f32 1.0, %v1758
        %v1760 = vmul.f32 %v1757, %v1759
        %v1761 = vadd.f32 %v1757, %v1760
        %vm1762 = vweird.f32 %v1333
        %vm1763 = vweird.f32 %v1757
        %vm1764 = vmor %vm1762, %vm1763
        %v1765 = vsel %vm1764, %v1757, %v1761
        %v1766 = vand.u32 2147483647, %v1333
        %vm1767 = vcmp.eq.f32.partialorder %v1766, 8.507059e+37
        %v1768 = vand.u32 %v1333, 2147483648
        %v1769 = vor.u32 1.1754944e-38, %v1768
        %v1770 = vsel %vm1767, %v1769, %v1765
        %v1771 = vrcp.pop %v1336
        %v1772 = vmul.f32 %v1336, %v1771
        %v1773 = vsub.f32 1.0, %v1772
        %v1774 = vmul.f32 %v1771, %v1773
        %v1775 = vadd.f32 %v1771, %v1774
        %vm1776 = vweird.f32 %v1336
        %vm1777 = vweird.f32 %v1771
        %vm1778 = vmor %vm1776, %vm1777
        %v1779 = vsel %vm1778, %v1771, %v1775
        %v1780 = vand.u32 2147483647, %v1336
        %vm1781 = vcmp.eq.f32.partialorder %v1780, 8.507059e+37
        %v1782 = vand.u32 %v1336, 2147483648
        %v1783 = vor.u32 1.1754944e-38, %v1782
        %v1784 = vsel %vm1781, %v1783, %v1779
        %v1785 = vmul.f32 %v1178, %v1350
        %v1786 = vmul.f32 %v1180, %v1364
        %v1787 = vmul.f32 %v1182, %v1378
        %v1788 = vmul.f32 %v1184, %v1392
        %v1789 = vmul.f32 %v1186, %v1406
        %v1790 = vmul.f32 %v1188, %v1420
        %v1791 = vmul.f32 %v1190, %v1434
        %v1792 = vmul.f32 %v1192, %v1448
        %v1793 = vmul.f32 %v1194, %v1462
        %v1794 = vmul.f32 %v1196, %v1476
        %v1795 = vmul.f32 %v1198, %v1490
        %v1796 = vmul.f32 %v1200, %v1504
        %v1797 = vmul.f32 %v1202, %v1518
        %v1798 = vmul.f32 %v1204, %v1532
        %v1799 = vmul.f32 %v1206, %v1546
        %v1800 = vmul.f32 %v1208, %v1560
        %v1801 = vmul.f32 %v1210, %v1574
        %v1802 = vmul.f32 %v1212, %v1588
        %v1803 = vmul.f32 %v1214, %v1602
        %v1804 = vmul.f32 %v1216, %v1616
        %v1805 = vmul.f32 %v1218, %v1630
        %v1806 = vmul.f32 %v1220, %v1644
        %v1807 = vmul.f32 %v1222, %v1658
        %v1808 = vmul.f32 %v1224, %v1672
        %v1809 = vmul.f32 %v1226, %v1686
        %v1810 = vmul.f32 %v1228, %v1700
        %v1811 = vmul.f32 %v1230, %v1714
        %v1812 = vmul.f32 %v1232, %v1728
        %v1813 = vmul.f32 %v1234, %v1742
        %v1814 = vmul.f32 %v1236, %v1756
        %v1815 = vmul.f32 %v1238, %v1770
        %v1816 = vmul.f32 %v1240, %v1784
        %v1818 = vsel %vm1048, %v611, 0
        %v1821 = vsel %vm1048, %v1785, 0
        %v1824 = vsel %vm1048, %v1786, 0
        %v1827 = vsel %vm1048, %v1787, 0
        %v1830 = vsel %vm1048, %v1788, 0
        %1832 = vmatpush.xpose.msra.mxu0 0.0
        %1833 = vmatpush.xpose.msra.mxu0 0.0
        %1834 = vmatpush.xpose.msra.mxu0 0.0
        %1835 = vmatpush.xpose.msra.mxu0 0.0
        %1836 = vmatpush.xpose.msra.mxu0 0.0
        %1837 = vmatpush.xpose.msra.mxu0 0.0
        %1838 = vmatpush.xpose.msra.mxu0 0.0
        %1839 = vmatpush.xpose.msra.mxu0 0.0
        %1840 = vmatpush.xpose.msra.mxu0 0.0
        %1841 = vmatpush.xpose.msra.mxu0 0.0
        %1842 = vmatpush.xpose.msra.mxu0 0.0
        %1843 = vmatpush.xpose.msra.mxu0 0.0
        %1844 = vmatpush.xpose.msra.mxu0 %v1830
        %1845 = vmatpush.xpose.msra.mxu0 %v1827
        %1846 = vmatpush.xpose.msra.mxu0 %v1824
        %1847 = vmatpush.xpose.msra.mxu0 %v1821
        %1848 = vmatmul.f32.gmra.mxu0 %v1818
        %v1849 = vpop.f32.mrf.mxu0
        %v1850 = vadd.f32 0.0, %v1849
        %1851 = vdwg.mxu0
        %v1853 = vsel %vm1048, %v612, 0
        %v1856 = vsel %vm1048, %v1789, 0
        %v1859 = vsel %vm1048, %v1790, 0
        %v1862 = vsel %vm1048, %v1791, 0
        %v1865 = vsel %vm1048, %v1792, 0
        %1867 = vmatpush.xpose.msra.mxu0 0.0
        %1868 = vmatpush.xpose.msra.mxu0 0.0
        %1869 = vmatpush.xpose.msra.mxu0 0.0
        %1870 = vmatpush.xpose.msra.mxu0 0.0
        %1871 = vmatpush.xpose.msra.mxu0 0.0
        %1872 = vmatpush.xpose.msra.mxu0 0.0
        %1873 = vmatpush.xpose.msra.mxu0 0.0
        %1874 = vmatpush.xpose.msra.mxu0 0.0
        %1875 = vmatpush.xpose.msra.mxu0 0.0
        %1876 = vmatpush.xpose.msra.mxu0 0.0
        %1877 = vmatpush.xpose.msra.mxu0 0.0
        %1878 = vmatpush.xpose.msra.mxu0 0.0
        %1879 = vmatpush.xpose.msra.mxu0 %v1865
        %1880 = vmatpush.xpose.msra.mxu0 %v1862
        %1881 = vmatpush.xpose.msra.mxu0 %v1859
        %1882 = vmatpush.xpose.msra.mxu0 %v1856
        %1883 = vmatmul.f32.gmra.mxu0 %v1853
        %v1884 = vpop.f32.mrf.mxu0
        %v1885 = vadd.f32 0.0, %v1884
        %1886 = vdwg.mxu0
        %v1888 = vsel %vm1048, %v613, 0
        %v1891 = vsel %vm1048, %v1793, 0
        %v1894 = vsel %vm1048, %v1794, 0
        %v1897 = vsel %vm1048, %v1795, 0
        %v1900 = vsel %vm1048, %v1796, 0
        %1902 = vmatpush.xpose.msra.mxu0 0.0
        %1903 = vmatpush.xpose.msra.mxu0 0.0
        %1904 = vmatpush.xpose.msra.mxu0 0.0
        %1905 = vmatpush.xpose.msra.mxu0 0.0
        %1906 = vmatpush.xpose.msra.mxu0 0.0
        %1907 = vmatpush.xpose.msra.mxu0 0.0
        %1908 = vmatpush.xpose.msra.mxu0 0.0
        %1909 = vmatpush.xpose.msra.mxu0 0.0
        %1910 = vmatpush.xpose.msra.mxu0 0.0
        %1911 = vmatpush.xpose.msra.mxu0 0.0
        %1912 = vmatpush.xpose.msra.mxu0 0.0
        %1913 = vmatpush.xpose.msra.mxu0 0.0
        %1914 = vmatpush.xpose.msra.mxu0 %v1900
        %1915 = vmatpush.xpose.msra.mxu0 %v1897
        %1916 = vmatpush.xpose.msra.mxu0 %v1894
        %1917 = vmatpush.xpose.msra.mxu0 %v1891
        %1918 = vmatmul.f32.gmra.mxu0 %v1888
        %v1919 = vpop.f32.mrf.mxu0
        %v1920 = vadd.f32 0.0, %v1919
        %1921 = vdwg.mxu0
        %v1923 = vsel %vm1048, %v614, 0
        %v1926 = vsel %vm1048, %v1797, 0
        %v1929 = vsel %vm1048, %v1798, 0
        %v1932 = vsel %vm1048, %v1799, 0
        %v1935 = vsel %vm1048, %v1800, 0
        %1937 = vmatpush.xpose.msra.mxu0 0.0
        %1938 = vmatpush.xpose.msra.mxu0 0.0
        %1939 = vmatpush.xpose.msra.mxu0 0.0
        %1940 = vmatpush.xpose.msra.mxu0 0.0
        %1941 = vmatpush.xpose.msra.mxu0 0.0
        %1942 = vmatpush.xpose.msra.mxu0 0.0
        %1943 = vmatpush.xpose.msra.mxu0 0.0
        %1944 = vmatpush.xpose.msra.mxu0 0.0
        %1945 = vmatpush.xpose.msra.mxu0 0.0
        %1946 = vmatpush.xpose.msra.mxu0 0.0
        %1947 = vmatpush.xpose.msra.mxu0 0.0
        %1948 = vmatpush.xpose.msra.mxu0 0.0
        %1949 = vmatpush.xpose.msra.mxu0 %v1935
        %1950 = vmatpush.xpose.msra.mxu0 %v1932
        %1951 = vmatpush.xpose.msra.mxu0 %v1929
        %1952 = vmatpush.xpose.msra.mxu0 %v1926
        %1953 = vmatmul.f32.gmra.mxu0 %v1923
        %v1954 = vpop.f32.mrf.mxu0
        %v1955 = vadd.f32 0.0, %v1954
        %1956 = vdwg.mxu0
        %v1958 = vsel %vm1048, %v615, 0
        %v1961 = vsel %vm1048, %v1801, 0
        %v1964 = vsel %vm1048, %v1802, 0
        %v1967 = vsel %vm1048, %v1803, 0
        %v1970 = vsel %vm1048, %v1804, 0
        %1972 = vmatpush.xpose.msra.mxu0 0.0
        %1973 = vmatpush.xpose.msra.mxu0 0.0
        %1974 = vmatpush.xpose.msra.mxu0 0.0
        %1975 = vmatpush.xpose.msra.mxu0 0.0
        %1976 = vmatpush.xpose.msra.mxu0 0.0
        %1977 = vmatpush.xpose.msra.mxu0 0.0
        %1978 = vmatpush.xpose.msra.mxu0 0.0
        %1979 = vmatpush.xpose.msra.mxu0 0.0
        %1980 = vmatpush.xpose.msra.mxu0 0.0
        %1981 = vmatpush.xpose.msra.mxu0 0.0
        %1982 = vmatpush.xpose.msra.mxu0 0.0
        %1983 = vmatpush.xpose.msra.mxu0 0.0
        %1984 = vmatpush.xpose.msra.mxu0 %v1970
        %1985 = vmatpush.xpose.msra.mxu0 %v1967
        %1986 = vmatpush.xpose.msra.mxu0 %v1964
        %1987 = vmatpush.xpose.msra.mxu0 %v1961
        %1988 = vmatmul.f32.gmra.mxu0 %v1958
        %v1989 = vpop.f32.mrf.mxu0
        %v1990 = vadd.f32 0.0, %v1989
        %1991 = vdwg.mxu0
        %v1993 = vsel %vm1048, %v616, 0
        %v1996 = vsel %vm1048, %v1805, 0
        %v1999 = vsel %vm1048, %v1806, 0
        %v2002 = vsel %vm1048, %v1807, 0
        %v2005 = vsel %vm1048, %v1808, 0
        %2007 = vmatpush.xpose.msra.mxu0 0.0
        %2008 = vmatpush.xpose.msra.mxu0 0.0
        %2009 = vmatpush.xpose.msra.mxu0 0.0
        %2010 = vmatpush.xpose.msra.mxu0 0.0
        %2011 = vmatpush.xpose.msra.mxu0 0.0
        %2012 = vmatpush.xpose.msra.mxu0 0.0
        %2013 = vmatpush.xpose.msra.mxu0 0.0
        %2014 = vmatpush.xpose.msra.mxu0 0.0
        %2015 = vmatpush.xpose.msra.mxu0 0.0
        %2016 = vmatpush.xpose.msra.mxu0 0.0
        %2017 = vmatpush.xpose.msra.mxu0 0.0
        %2018 = vmatpush.xpose.msra.mxu0 0.0
        %2019 = vmatpush.xpose.msra.mxu0 %v2005
        %2020 = vmatpush.xpose.msra.mxu0 %v2002
        %2021 = vmatpush.xpose.msra.mxu0 %v1999
        %2022 = vmatpush.xpose.msra.mxu0 %v1996
        %2023 = vmatmul.f32.gmra.mxu0 %v1993
        %v2024 = vpop.f32.mrf.mxu0
        %v2025 = vadd.f32 0.0, %v2024
        %2026 = vdwg.mxu0
        %v2028 = vsel %vm1048, %v617, 0
        %v2031 = vsel %vm1048, %v1809, 0
        %v2034 = vsel %vm1048, %v1810, 0
        %v2037 = vsel %vm1048, %v1811, 0
        %v2040 = vsel %vm1048, %v1812, 0
        %2042 = vmatpush.xpose.msra.mxu0 0.0
        %2043 = vmatpush.xpose.msra.mxu0 0.0
        %2044 = vmatpush.xpose.msra.mxu0 0.0
        %2045 = vmatpush.xpose.msra.mxu0 0.0
        %2046 = vmatpush.xpose.msra.mxu0 0.0
        %2047 = vmatpush.xpose.msra.mxu0 0.0
        %2048 = vmatpush.xpose.msra.mxu0 0.0
        %2049 = vmatpush.xpose.msra.mxu0 0.0
        %2050 = vmatpush.xpose.msra.mxu0 0.0
        %2051 = vmatpush.xpose.msra.mxu0 0.0
        %2052 = vmatpush.xpose.msra.mxu0 0.0
        %2053 = vmatpush.xpose.msra.mxu0 0.0
        %2054 = vmatpush.xpose.msra.mxu0 %v2040
        %2055 = vmatpush.xpose.msra.mxu0 %v2037
        %2056 = vmatpush.xpose.msra.mxu0 %v2034
        %2057 = vmatpush.xpose.msra.mxu0 %v2031
        %2058 = vmatmul.f32.gmra.mxu0 %v2028
        %v2059 = vpop.f32.mrf.mxu0
        %v2060 = vadd.f32 0.0, %v2059
        %2061 = vdwg.mxu0
        %v2063 = vsel %vm1048, %v618, 0
        %v2066 = vsel %vm1048, %v1813, 0
        %v2069 = vsel %vm1048, %v1814, 0
        %v2072 = vsel %vm1048, %v1815, 0
        %v2075 = vsel %vm1048, %v1816, 0
        %2077 = vmatpush.xpose.msra.mxu0 0.0
        %2078 = vmatpush.xpose.msra.mxu0 0.0
        %2079 = vmatpush.xpose.msra.mxu0 0.0
        %2080 = vmatpush.xpose.msra.mxu0 0.0
        %2081 = vmatpush.xpose.msra.mxu0 0.0
        %2082 = vmatpush.xpose.msra.mxu0 0.0
        %2083 = vmatpush.xpose.msra.mxu0 0.0
        %2084 = vmatpush.xpose.msra.mxu0 0.0
        %2085 = vmatpush.xpose.msra.mxu0 0.0
        %2086 = vmatpush.xpose.msra.mxu0 0.0
        %2087 = vmatpush.xpose.msra.mxu0 0.0
        %2088 = vmatpush.xpose.msra.mxu0 0.0
        %2089 = vmatpush.xpose.msra.mxu0 %v2075
        %2090 = vmatpush.xpose.msra.mxu0 %v2072
        %2091 = vmatpush.xpose.msra.mxu0 %v2069
        %2092 = vmatpush.xpose.msra.mxu0 %v2066
        %2093 = vmatmul.f32.gmra.mxu0 %v2063
        %v2094 = vpop.f32.mrf.mxu0
        %v2095 = vadd.f32 0.0, %v2094
        %2096 = vdwg.mxu0
        %2097 = vxpose.xlu0.b32.start [1/16] %v1850, 128
        %2098 = vxpose.xlu0.b32.cont [2/16] %v1885, 128
        %2099 = vxpose.xlu0.b32.cont [3/16] %v1920, 128
        %2100 = vxpose.xlu0.b32.cont [4/16] %v1955, 128
        %2101 = vxpose.xlu0.b32.cont [5/16] %v1990, 128
        %2102 = vxpose.xlu0.b32.cont [6/16] %v2025, 128
        %2103 = vxpose.xlu0.b32.cont [7/16] %v2060, 128
        %2104 = vxpose.xlu0.b32.cont [8/16] %v2095, 128
        %2105 = vxpose.xlu0.b32.cont [9/16] 0.0, 128
        %2106 = vxpose.xlu0.b32.cont [10/16] 0.0, 128
        %2107 = vxpose.xlu0.b32.cont [11/16] 0.0, 128
        %2108 = vxpose.xlu0.b32.cont [12/16] 0.0, 128
        %2109 = vxpose.xlu0.b32.cont [13/16] 0.0, 128
        %2110 = vxpose.xlu0.b32.cont [14/16] 0.0, 128
        %2111 = vxpose.xlu0.b32.cont [15/16] 0.0, 128
        %2112 = vxpose.xlu0.b32.end [16/16] 0.0, 128
        %v2113 = vpop.trf.xlu0
        %v2114 = vpop.trf.xlu0
        %v2115 = vpop.trf.xlu0
        %v2116 = vpop.trf.xlu0
        %v2117 = vpop.trf.xlu0
        %v2118 = vpop.trf.xlu0
        %v2119 = vpop.trf.xlu0
        %v2120 = vpop.trf.xlu0
        %v2121 = vpop.trf.xlu0
        %v2122 = vpop.trf.xlu0
        %v2123 = vpop.trf.xlu0
        %v2124 = vpop.trf.xlu0
        %v2125 = vpop.trf.xlu0
        %v2126 = vpop.trf.xlu0
        %v2127 = vpop.trf.xlu0
        %v2128 = vpop.trf.xlu0
        %v2129 = vld [vmem:[%s4] sm:$0xff]
        %v2130 = vld [vmem:[%s4 + $0x8] sm:$0xff]
        %v2131 = vld [vmem:[%s4 + $0x10] sm:$0xff]
        %v2132 = vld [vmem:[%s4 + $0x18] sm:$0xff]
        %v2133 = vld [vmem:[%s4 + $0x20] sm:$0xff]
        %v2134 = vld [vmem:[%s4 + $0x28] sm:$0xff]
        %v2135 = vld [vmem:[%s4 + $0x30] sm:$0xff]
        %v2136 = vld [vmem:[%s4 + $0x38] sm:$0xff]
        %v2137 = vld [vmem:[%s5] sm:$0x1]
        %v2139 = vperm.slane %v2137, 0
        %v2142 = vsel %vm492, %v2113, 0
        %v2145 = vsel %vm492, %v2114, 0
        %v2148 = vsel %vm492, %v2115, 0
        %v2151 = vsel %vm492, %v2116, 0
        %2153 = vmatpush.msra.mxu0 0.0
        %2154 = vmatpush.msra.mxu0 0.0
        %2155 = vmatpush.msra.mxu0 0.0
        %2156 = vmatpush.msra.mxu0 0.0
        %2157 = vmatpush.msra.mxu0 0.0
        %2158 = vmatpush.msra.mxu0 0.0
        %2159 = vmatpush.msra.mxu0 0.0
        %2160 = vmatpush.msra.mxu0 0.0
        %2161 = vmatpush.msra.mxu0 %v2136
        %2162 = vmatpush.msra.mxu0 %v2135
        %2163 = vmatpush.msra.mxu0 %v2134
        %2164 = vmatpush.msra.mxu0 %v2133
        %2165 = vmatpush.msra.mxu0 %v2132
        %2166 = vmatpush.msra.mxu0 %v2131
        %2167 = vmatpush.msra.mxu0 %v2130
        %2168 = vmatpush.msra.mxu0 %v2129
        %2169 = vmatmul.f32.gmra.mxu0 %v2142
        %v2170 = vpop.f32.mrf.mxu0
        %v2171 = vadd.f32 %v2139, %v2170
        %2172 = vmatmul.f32.gmra.mxu0 %v2145
        %v2173 = vpop.f32.mrf.mxu0
        %v2174 = vadd.f32 %v2139, %v2173
        %2175 = vmatmul.f32.gmra.mxu0 %v2148
        %v2176 = vpop.f32.mrf.mxu0
        %v2177 = vadd.f32 %v2139, %v2176
        %2178 = vmatmul.f32.gmra.mxu0 %v2151
        %v2179 = vpop.f32.mrf.mxu0
        %v2180 = vadd.f32 %v2139, %v2179
        %2181 = vdwg.mxu0
        %v2182 = vadd.f32 %v466, %v2171
        %v2183 = vadd.f32 %v467, %v2174
        %v2184 = vadd.f32 %v468, %v2177
        %v2185 = vadd.f32 %v469, %v2180
        %v2186 = vld [vmem:[%s6] sm:$0x1]
        %v2187 = vld [vmem:[%s7] sm:$0x1]
        %v2188 = vsel %vm492, %v2182, 0.0
        %2189 = vadd.xlane.f32.xlu0 %v2188
        %v2190 = vpop.xlane.xlu0 %2189
        %v2191 = vsel %vm492, %v2183, 0.0
        %2192 = vadd.xlane.f32.xlu0 %v2191
        %v2193 = vpop.xlane.xlu0 %2192
        %v2194 = vsel %vm492, %v2184, 0.0
        %2195 = vadd.xlane.f32.xlu0 %v2194
        %v2196 = vpop.xlane.xlu0 %2195
        %v2197 = vsel %vm492, %v2185, 0.0
        %2198 = vadd.xlane.f32.xlu0 %v2197
        %v2199 = vpop.xlane.xlu0 %2198
        %v2200 = vrcp.pop 64.0
        %v2201 = vmul.f32 64.0, %v2200
        %v2202 = vsub.f32 1.0, %v2201
        %v2203 = vmul.f32 %v2200, %v2202
        %v2204 = vadd.f32 %v2200, %v2203
        %vm2205 = vweird.f32 %v2200
        %v2206 = vsel %vm2205, %v2200, %v2204
        %v2207 = vmul.f32 %v2190, %v2206
        %v2208 = vmul.f32 %v2193, %v2206
        %v2209 = vmul.f32 %v2196, %v2206
        %v2210 = vmul.f32 %v2199, %v2206
        %v2211 = vsub.f32 %v2182, %v2207
        %v2212 = vsub.f32 %v2183, %v2208
        %v2213 = vsub.f32 %v2184, %v2209
        %v2214 = vsub.f32 %v2185, %v2210
        %v2215 = vmul.f32 %v2211, %v2211
        %v2216 = vmul.f32 %v2212, %v2212
        %v2217 = vmul.f32 %v2213, %v2213
        %v2218 = vmul.f32 %v2214, %v2214
        %v2219 = vsel %vm492, %v2215, 0.0
        %2220 = vadd.xlane.f32.xlu0 %v2219
        %v2221 = vpop.xlane.xlu0 %2220
        %v2222 = vsel %vm492, %v2216, 0.0
        %2223 = vadd.xlane.f32.xlu0 %v2222
        %v2224 = vpop.xlane.xlu0 %2223
        %v2225 = vsel %vm492, %v2217, 0.0
        %2226 = vadd.xlane.f32.xlu0 %v2225
        %v2227 = vpop.xlane.xlu0 %2226
        %v2228 = vsel %vm492, %v2218, 0.0
        %2229 = vadd.xlane.f32.xlu0 %v2228
        %v2230 = vpop.xlane.xlu0 %2229
        %v2231 = vmul.f32 %v2221, %v2206
        %v2232 = vmul.f32 %v2224, %v2206
        %v2233 = vmul.f32 %v2227, %v2206
        %v2234 = vmul.f32 %v2230, %v2206
        %v2235 = vadd.f32 %v2231, 1e-05
        %v2236 = vadd.f32 %v2232, 1e-05
        %v2237 = vadd.f32 %v2233, 1e-05
        %v2238 = vadd.f32 %v2234, 1e-05
        %v2239 = vrsqrt.pop %v2235
        %v2240 = vmul.f32 %v2239, %v2235
        %v2241 = vmul.f32 %v2240, %v2239
        %v2242 = vmul.f32 0.5, %v2241
        %v2243 = vsub.f32 1.5, %v2242
        %v2244 = vmul.f32 %v2239, %v2243
        %vm2245 = vweird.f32 %v2235
        %vm2246 = vweird.f32 %v2239
        %vm2247 = vmor %vm2245, %vm2246
        %v2248 = vsel %vm2247, %v2239, %v2244
        %v2249 = vrsqrt.pop %v2236
        %v2250 = vmul.f32 %v2249, %v2236
        %v2251 = vmul.f32 %v2250, %v2249
        %v2252 = vmul.f32 0.5, %v2251
        %v2253 = vsub.f32 1.5, %v2252
        %v2254 = vmul.f32 %v2249, %v2253
        %vm2255 = vweird.f32 %v2236
        %vm2256 = vweird.f32 %v2249
        %vm2257 = vmor %vm2255, %vm2256
        %v2258 = vsel %vm2257, %v2249, %v2254
        %v2259 = vrsqrt.pop %v2237
        %v2260 = vmul.f32 %v2259, %v2237
        %v2261 = vmul.f32 %v2260, %v2259
        %v2262 = vmul.f32 0.5, %v2261
        %v2263 = vsub.f32 1.5, %v2262
        %v2264 = vmul.f32 %v2259, %v2263
        %vm2265 = vweird.f32 %v2237
        %vm2266 = vweird.f32 %v2259
        %vm2267 = vmor %vm2265, %vm2266
        %v2268 = vsel %vm2267, %v2259, %v2264
        %v2269 = vrsqrt.pop %v2238
        %v2270 = vmul.f32 %v2269, %v2238
        %v2271 = vmul.f32 %v2270, %v2269
        %v2272 = vmul.f32 0.5, %v2271
        %v2273 = vsub.f32 1.5, %v2272
        %v2274 = vmul.f32 %v2269, %v2273
        %vm2275 = vweird.f32 %v2238
        %vm2276 = vweird.f32 %v2269
        %vm2277 = vmor %vm2275, %vm2276
        %v2278 = vsel %vm2277, %v2269, %v2274
        %v2279 = vmul.f32 %v2211, %v2248
        %v2280 = vmul.f32 %v2212, %v2258
        %v2281 = vmul.f32 %v2213, %v2268
        %v2282 = vmul.f32 %v2214, %v2278
        %v2284 = vperm.slane %v2186, 0
        %v2286 = vmul.f32 %v2279, %v2284
        %v2287 = vmul.f32 %v2280, %v2284
        %v2288 = vmul.f32 %v2281, %v2284
        %v2289 = vmul.f32 %v2282, %v2284
        %v2291 = vperm.slane %v2187, 0
        %v2293 = vadd.f32 %v2286, %v2291
        %v2294 = vadd.f32 %v2287, %v2291
        %v2295 = vadd.f32 %v2288, %v2291
        %v2296 = vadd.f32 %v2289, %v2291
        %v2297 = vld [vmem:[%s8] sm:$0xff]
        %v2298 = vld [vmem:[%s8 + $0x8] sm:$0xff]
        %v2299 = vld [vmem:[%s8 + $0x10] sm:$0xff]
        %v2300 = vld [vmem:[%s8 + $0x18] sm:$0xff]
        %v2301 = vld [vmem:[%s8 + $0x20] sm:$0xff]
        %v2302 = vld [vmem:[%s8 + $0x28] sm:$0xff]
        %v2303 = vld [vmem:[%s8 + $0x30] sm:$0xff]
        %v2304 = vld [vmem:[%s8 + $0x38] sm:$0xff]
        %v2305 = vld [vmem:[%s9] sm:$0x1]
        %v2307 = vperm.slane %v2305, 0
        %v2310 = vsel %vm492, %v2293, 0
        %v2313 = vsel %vm492, %v2294, 0
        %v2316 = vsel %vm492, %v2295, 0
        %v2319 = vsel %vm492, %v2296, 0
        %2321 = vmatpush.msra.mxu0 0.0
        %2322 = vmatpush.msra.mxu0 0.0
        %2323 = vmatpush.msra.mxu0 0.0
        %2324 = vmatpush.msra.mxu0 0.0
        %2325 = vmatpush.msra.mxu0 0.0
        %2326 = vmatpush.msra.mxu0 0.0
        %2327 = vmatpush.msra.mxu0 0.0
        %2328 = vmatpush.msra.mxu0 0.0
        %2329 = vmatpush.msra.mxu0 %v2304
        %2330 = vmatpush.msra.mxu0 %v2303
        %2331 = vmatpush.msra.mxu0 %v2302
        %2332 = vmatpush.msra.mxu0 %v2301
        %2333 = vmatpush.msra.mxu0 %v2300
        %2334 = vmatpush.msra.mxu0 %v2299
        %2335 = vmatpush.msra.mxu0 %v2298
        %2336 = vmatpush.msra.mxu0 %v2297
        %2337 = vmatmul.f32.gmra.mxu0 %v2310
        %v2338 = vpop.f32.mrf.mxu0
        %v2339 = vadd.f32 %v2307, %v2338
        %2340 = vmatmul.f32.gmra.mxu0 %v2313
        %v2341 = vpop.f32.mrf.mxu0
        %v2342 = vadd.f32 %v2307, %v2341
        %2343 = vmatmul.f32.gmra.mxu0 %v2316
        %v2344 = vpop.f32.mrf.mxu0
        %v2345 = vadd.f32 %v2307, %v2344
        %2346 = vmatmul.f32.gmra.mxu0 %v2319
        %v2347 = vpop.f32.mrf.mxu0
        %v2348 = vadd.f32 %v2307, %v2347
        %2349 = vdwg.mxu0
        %v2350 = vmax.f32 %v2339, 0.0
        %v2351 = vmax.f32 %v2342, 0.0
        %v2352 = vmax.f32 %v2345, 0.0
        %v2353 = vmax.f32 %v2348, 0.0
        %v2354 = vld [vmem:[%s10] sm:$0xff]
        %v2355 = vld [vmem:[%s10 + $0x8] sm:$0xff]
        %v2356 = vld [vmem:[%s10 + $0x10] sm:$0xff]
        %v2357 = vld [vmem:[%s10 + $0x18] sm:$0xff]
        %v2358 = vld [vmem:[%s10 + $0x20] sm:$0xff]
        %v2359 = vld [vmem:[%s10 + $0x28] sm:$0xff]
        %v2360 = vld [vmem:[%s10 + $0x30] sm:$0xff]
        %v2361 = vld [vmem:[%s10 + $0x38] sm:$0xff]
        %v2362 = vld [vmem:[%s10 + $0x40] sm:$0xff]
        %v2363 = vld [vmem:[%s10 + $0x48] sm:$0xff]
        %v2364 = vld [vmem:[%s10 + $0x50] sm:$0xff]
        %v2365 = vld [vmem:[%s10 + $0x58] sm:$0xff]
        %v2366 = vld [vmem:[%s10 + $0x60] sm:$0xff]
        %v2367 = vld [vmem:[%s10 + $0x68] sm:$0xff]
        %v2368 = vld [vmem:[%s10 + $0x70] sm:$0xff]
        %v2369 = vld [vmem:[%s10 + $0x78] sm:$0xff]
        %v2370 = vld [vmem:[%s11] sm:$0x1]
        %v2372 = vperm.slane %v2370, 0
        %2374 = vmatpush.msra.mxu0 %v2369
        %2375 = vmatpush.msra.mxu0 %v2368
        %2376 = vmatpush.msra.mxu0 %v2367
        %2377 = vmatpush.msra.mxu0 %v2366
        %2378 = vmatpush.msra.mxu0 %v2365
        %2379 = vmatpush.msra.mxu0 %v2364
        %2380 = vmatpush.msra.mxu0 %v2363
        %2381 = vmatpush.msra.mxu0 %v2362
        %2382 = vmatpush.msra.mxu0 %v2361
        %2383 = vmatpush.msra.mxu0 %v2360
        %2384 = vmatpush.msra.mxu0 %v2359
        %2385 = vmatpush.msra.mxu0 %v2358
        %2386 = vmatpush.msra.mxu0 %v2357
        %2387 = vmatpush.msra.mxu0 %v2356
        %2388 = vmatpush.msra.mxu0 %v2355
        %2389 = vmatpush.msra.mxu0 %v2354
        %2390 = vmatmul.f32.gmra.mxu0 %v2350
        %v2391 = vpop.f32.mrf.mxu0
        %v2392 = vadd.f32 %v2372, %v2391
        %2393 = vmatmul.f32.gmra.mxu0 %v2351
        %v2394 = vpop.f32.mrf.mxu0
        %v2395 = vadd.f32 %v2372, %v2394
        %2396 = vmatmul.f32.gmra.mxu0 %v2352
        %v2397 = vpop.f32.mrf.mxu0
        %v2398 = vadd.f32 %v2372, %v2397
        %2399 = vmatmul.f32.gmra.mxu0 %v2353
        %v2400 = vpop.f32.mrf.mxu0
        %v2401 = vadd.f32 %v2372, %v2400
        %2402 = vdwg.mxu0
        %v2403 = vadd.f32 %v2293, %v2392
        %v2404 = vadd.f32 %v2294, %v2395
        %v2405 = vadd.f32 %v2295, %v2398
        %v2406 = vadd.f32 %v2296, %v2401
        %v2407 = vld [vmem:[%s12] sm:$0x1]
        %v2408 = vld [vmem:[%s13] sm:$0x1]
        %v2409 = vsel %vm492, %v2403, 0.0
        %2410 = vadd.xlane.f32.xlu0 %v2409
        %v2411 = vpop.xlane.xlu0 %2410
        %v2412 = vsel %vm492, %v2404, 0.0
        %2413 = vadd.xlane.f32.xlu0 %v2412
        %v2414 = vpop.xlane.xlu0 %2413
        %v2415 = vsel %vm492, %v2405, 0.0
        %2416 = vadd.xlane.f32.xlu0 %v2415
        %v2417 = vpop.xlane.xlu0 %2416
        %v2418 = vsel %vm492, %v2406, 0.0
        %2419 = vadd.xlane.f32.xlu0 %v2418
        %v2420 = vpop.xlane.xlu0 %2419
        %v2421 = vmul.f32 %v2411, %v2206
        %v2422 = vmul.f32 %v2414, %v2206
        %v2423 = vmul.f32 %v2417, %v2206
        %v2424 = vmul.f32 %v2420, %v2206
        %v2425 = vsub.f32 %v2403, %v2421
        %v2426 = vsub.f32 %v2404, %v2422
        %v2427 = vsub.f32 %v2405, %v2423
        %v2428 = vsub.f32 %v2406, %v2424
        %v2429 = vmul.f32 %v2425, %v2425
        %v2430 = vmul.f32 %v2426, %v2426
        %v2431 = vmul.f32 %v2427, %v2427
        %v2432 = vmul.f32 %v2428, %v2428
        %v2433 = vsel %vm492, %v2429, 0.0
        %2434 = vadd.xlane.f32.xlu0 %v2433
        %v2435 = vpop.xlane.xlu0 %2434
        %v2436 = vsel %vm492, %v2430, 0.0
        %2437 = vadd.xlane.f32.xlu0 %v2436
        %v2438 = vpop.xlane.xlu0 %2437
        %v2439 = vsel %vm492, %v2431, 0.0
        %2440 = vadd.xlane.f32.xlu0 %v2439
        %v2441 = vpop.xlane.xlu0 %2440
        %v2442 = vsel %vm492, %v2432, 0.0
        %2443 = vadd.xlane.f32.xlu0 %v2442
        %v2444 = vpop.xlane.xlu0 %2443
        %v2445 = vmul.f32 %v2435, %v2206
        %v2446 = vmul.f32 %v2438, %v2206
        %v2447 = vmul.f32 %v2441, %v2206
        %v2448 = vmul.f32 %v2444, %v2206
        %v2449 = vadd.f32 %v2445, 1e-05
        %v2450 = vadd.f32 %v2446, 1e-05
        %v2451 = vadd.f32 %v2447, 1e-05
        %v2452 = vadd.f32 %v2448, 1e-05
        %v2453 = vrsqrt.pop %v2449
        %v2454 = vmul.f32 %v2453, %v2449
        %v2455 = vmul.f32 %v2454, %v2453
        %v2456 = vmul.f32 0.5, %v2455
        %v2457 = vsub.f32 1.5, %v2456
        %v2458 = vmul.f32 %v2453, %v2457
        %vm2459 = vweird.f32 %v2449
        %vm2460 = vweird.f32 %v2453
        %vm2461 = vmor %vm2459, %vm2460
        %v2462 = vsel %vm2461, %v2453, %v2458
        %v2463 = vrsqrt.pop %v2450
        %v2464 = vmul.f32 %v2463, %v2450
        %v2465 = vmul.f32 %v2464, %v2463
        %v2466 = vmul.f32 0.5, %v2465
        %v2467 = vsub.f32 1.5, %v2466
        %v2468 = vmul.f32 %v2463, %v2467
        %vm2469 = vweird.f32 %v2450
        %vm2470 = vweird.f32 %v2463
        %vm2471 = vmor %vm2469, %vm2470
        %v2472 = vsel %vm2471, %v2463, %v2468
        %v2473 = vrsqrt.pop %v2451
        %v2474 = vmul.f32 %v2473, %v2451
        %v2475 = vmul.f32 %v2474, %v2473
        %v2476 = vmul.f32 0.5, %v2475
        %v2477 = vsub.f32 1.5, %v2476
        %v2478 = vmul.f32 %v2473, %v2477
        %vm2479 = vweird.f32 %v2451
        %vm2480 = vweird.f32 %v2473
        %vm2481 = vmor %vm2479, %vm2480
        %v2482 = vsel %vm2481, %v2473, %v2478
        %v2483 = vrsqrt.pop %v2452
        %v2484 = vmul.f32 %v2483, %v2452
        %v2485 = vmul.f32 %v2484, %v2483
        %v2486 = vmul.f32 0.5, %v2485
        %v2487 = vsub.f32 1.5, %v2486
        %v2488 = vmul.f32 %v2483, %v2487
        %vm2489 = vweird.f32 %v2452
        %vm2490 = vweird.f32 %v2483
        %vm2491 = vmor %vm2489, %vm2490
        %v2492 = vsel %vm2491, %v2483, %v2488
        %v2493 = vmul.f32 %v2425, %v2462
        %v2494 = vmul.f32 %v2426, %v2472
        %v2495 = vmul.f32 %v2427, %v2482
        %v2496 = vmul.f32 %v2428, %v2492
        %v2498 = vperm.slane %v2407, 0
        %v2500 = vmul.f32 %v2493, %v2498
        %v2501 = vmul.f32 %v2494, %v2498
        %v2502 = vmul.f32 %v2495, %v2498
        %v2503 = vmul.f32 %v2496, %v2498
        %v2505 = vperm.slane %v2408, 0
        %v2507 = vadd.f32 %v2500, %v2505
        %v2508 = vadd.f32 %v2501, %v2505
        %v2509 = vadd.f32 %v2502, %v2505
        %v2510 = vadd.f32 %v2503, %v2505
        %2511 = vst.msk [vmem:[%s460] sm:$0xff] %vm492, %v2507
        %2512 = vst.msk [vmem:[%s460 + $0x8] sm:$0xff] %vm492, %v2508
        %2513 = vst.msk [vmem:[%s460 + $0x10] sm:$0xff] %vm492, %v2509
        %2514 = vst.msk [vmem:[%s460 + $0x18] sm:$0xff] %vm492, %v2510
        %s2515 = sand.u32 %s335, 1
        %s2516 = scalar_lea.sflag [#allocation3], %s2515
        %s2517 = sand.u32 %s335, 1
        %s2518 = smul.addr %s2517, 32
        %s2519 = scalar_lea.vmem [#allocation2], %s2518
        // Predicated region
        $region77: #{tpu_custom_call.1} parent=75 // pred_check
          %p2520 = pneg %p345
        $region78: #{tpu_custom_call.1} parent=75 // pred_check_branch
          %2522 = sbr.rel (%p2520) target = $region80
        $region79: #{tpu_custom_call.1} parent=75 // pred_region
          %2524 = vsyncadd %s2516, 0
          %s2525 = smul.addr %s28, 4
          %s2526 = smul.addr %s2525, 8
          %s2527 = scalar_lea.hbm %s14, %s2526
          %s2528 = sshll.u32 %s2519, 4
          %s2529 = int_to_ptr.vmem [resolvable:$true] %s2528
          %s2530 = sshll.u32 %s2527, 4
          %s2531 = int_to_ptr.hbm [resolvable:$true] %s2530
          %2536 = dma.vmem_to_hbm [thread:$0]  %s2529, 512, %s2531, %s2516, 128, 128, 8
        $region80: #{tpu_custom_call.1} parent=75 // pred_fallthru
          _
      $region76: #{tpu_custom_call.1} parent=5 // pred_fallthru
        _
      %p2537 = scmp.le.s32.totalorder 2, %s23
      // Predicated region
      $region81: #{tpu_custom_call.1} parent=5 // pred_check
        %p2538 = pneg %p2537
      $region82: #{tpu_custom_call.1} parent=5 // pred_check_branch
        %2540 = sbr.rel (%p2538) target = $region84
      $region83: #{tpu_custom_call.1} parent=5 // pred_region
        %s2541 = ssub.s32 %s23, 2
        // Predicated region
        $region85: #{tpu_custom_call.1} parent=83 // pred_check
          %p2542 = pneg %p351
        $region86: #{tpu_custom_call.1} parent=83 // pred_check_branch
          %2544 = sbr.rel (%p2542) target = $region88
        $region87: #{tpu_custom_call.1} parent=83 // pred_region
          %s2545 = sand.u32 %s336, 1
          %s2546 = scalar_lea.sflag [#allocation3], %s2545
          %s2547 = sand.u32 %s336, 1
          %s2548 = smul.addr %s2547, 32
          %s2549 = scalar_lea.vmem [#allocation2], %s2548
          %2551 = dma.done %s2546, 512
        $region88: #{tpu_custom_call.1} parent=83 // pred_fallthru
          _
      $region84: #{tpu_custom_call.1} parent=5 // pred_fallthru
        _
    $region6: #{tpu_custom_call.1} parent=1 // loop_footer
      %s27 = sadd.s32 1, %s23
    $region7: #{tpu_custom_call.1} parent=1 // loop_footer_branch
      %22 = sbr.rel target = $region3
    $region8: #{tpu_custom_call.1} parent=1 // loop_exit
      _
    %2552 = vsyncpa [#allocation3], 1
    %s2553 = scalar_lea.sflag [#allocation3], 1
    %2554 = vsyncpa %s2553, 1

</llo_original>
